<compile_context>
chip_gen: v6e
topology: v6e:2x2x1
jax: 0.10.0
libtpu: 0.0.40
codegen_flags: <defaults>
</compile_context>

<pallas_src>
import jax
import jax.numpy as jnp
from jax.experimental import pallas as pl
from jax.experimental.pallas import tpu as pltpu

# ------------------------- model / args configuration -------------------------
HIDDEN_DIM = 64            # args.hidden_dim
N_LAYERS = 2               # args.n_layers
N_TEST = 100               # args.n_test
N_QUESTIONS = 1000         # args.n_questions
N_TAG = 200                # args.n_tag
ISINFER = True             # args.isinfer

HD3 = HIDDEN_DIM // 3      # 21   per-embedding width
E4 = HD3 * 4               # 84   concat embedding width (comb_proj input)
H = HIDDEN_DIM             # 64
G4 = 4 * H                 # 256  gate width [i, f, g, o]

B, S = 2, 8                # batch, sequence length
SB = S * B                 # 16 flattened rows (seq-major: row = s*B + b)


# ------------------------------- the Pallas kernel --------------------------------
def lstm_kernel(x_ref,        # (S*B, E4)  concatenated embeddings, seq-major rows
                wcomb_ref,    # (E4, H)    comb_proj weight (stored transposed)
                bcomb_ref,    # (1, H)     comb_proj bias
                wih_ref,      # (L, H, G4) LSTM W_ih^T per layer, gate order [i,f,g,o]
                whh_ref,      # (L, H, G4) LSTM W_hh^T per layer
                b_ref,        # (L, 1, G4) combined bias b_ih + b_hh per layer
                wfc_ref,      # (1, H)     fc weight (row, same layout as torch)
                bfc_ref,      # (1, 1)     fc bias
                out_ref,      # (1, S*B)   sigmoid(logits), ordered s-major
                hseq_ref):    # scratch (S*B, H): current layer's full output sequence
    f32 = jnp.float32

    # comb_proj over all S*B rows in a single matmul.
    x = x_ref[...]
    hseq_ref[...] = jnp.dot(x, wcomb_ref[...], preferred_element_type=f32) + bcomb_ref[...]

    for l in range(N_LAYERS):                      # static layer loop
        wih = wih_ref[l]                           # (H, G4)
        whh = whh_ref[l]                           # (H, G4)
        bias = b_ref[l]                            # (1, G4)

        # Input->gate contribution for ALL time steps in one (S*B, H) @ (H, 4H) matmul.
        layer_x = hseq_ref[...]                    # (S*B, H)
        xg = jnp.dot(layer_x, wih, preferred_element_type=f32) + bias   # (S*B, G4)

        h = jnp.zeros((B, H), f32)
        c = jnp.zeros((B, H), f32)

        # Sequential LSTM recurrence, fully unrolled (S = 8 steps); only a tiny
        # (B, H) @ (H, 4H) matmul + elementwise gates per step.
        for t in range(S):
            r0 = t * B
            gates = xg[r0:r0 + B, :] + jnp.dot(h, whh, preferred_element_type=f32)
            i = jax.nn.sigmoid(gates[:, 0:H])
            f = jax.nn.sigmoid(gates[:, H:2 * H])
            g = jnp.tanh(gates[:, 2 * H:3 * H])
            o = jax.nn.sigmoid(gates[:, 3 * H:4 * H])
            c = f * c + i * g
            h = o * jnp.tanh(c)
            # Overwrite the layer input in place; xg for this layer is already computed.
            hseq_ref[r0:r0 + B, :] = h

    # fc + sigmoid over all rows, produced lane-dense as a single (1, S*B) row:
    # logits[0, r] = hseq[r, :] . wfc  + bfc
    hs = hseq_ref[...]                              # (S*B, H)
    logits = jax.lax.dot_general(wfc_ref[...], hs, (((1,), (1,)), ((), ())),
                                 preferred_element_type=f32) + bfc_ref[...]
    if ISINFER:
        logits = jax.nn.sigmoid(logits)
    out_ref[...] = logits


# --------------------------------- JAX wrapper -------------------------------------
@jax.jit
def lstm_forward(params, test, question, tag, interaction):
    # nn.Embedding lookups (gather) as plain-JAX glue, then concat along features.
    emb = jnp.concatenate([
        params["emb_interaction"][interaction],
        params["emb_test"][test],
        params["emb_question"][question],
        params["emb_tag"][tag],
    ], axis=-1)                                    # (B, S, E4)

    # Seq-major flatten: row r = s*B + b  (the recurrence slices contiguous B-row blocks).
    x = jnp.transpose(emb, (1, 0, 2)).reshape(SB, E4)

    vmem = pl.BlockSpec(memory_space=pltpu.MemorySpace.VMEM)
    out = pl.pallas_call(
        lstm_kernel,
        out_shape=jax.ShapeDtypeStruct((1, SB), jnp.float32),
        in_specs=[vmem] * 8,
        out_specs=vmem,
        scratch_shapes=[pltpu.VMEM((SB, H), jnp.float32)],
    )(x, params["w_comb"], params["b_comb"],
      params["wih"], params["whh"], params["b"],
      params["wfc"], params["bfc"])

    # (1, S*B) row ordered (s, b)  ->  (B, S), matching torch's .view(batch_size, -1).
    return jnp.transpose(out.reshape(S, B), (1, 0))


# ------------------------------ parameter creation ---------------------------------
def init_params(key):
    ks = iter(jax.random.split(key, 16))
    nk = lambda: next(ks)
    nrm = lambda k, shape, s=0.1: s * jax.random.normal(k, shape, dtype=jnp.float32)
    p = {}
    p["emb_interaction"] = nrm(nk(), (3, HD3), 0.5)
    p["emb_test"] = nrm(nk(), (N_TEST + 1, HD3), 0.5)
    p["emb_question"] = nrm(nk(), (N_QUESTIONS + 1, HD3), 0.5)
    p["emb_tag"] = nrm(nk(), (N_TAG + 1, HD3), 0.5)
    p["w_comb"] = nrm(nk(), (E4, H))                 # stored (in, out) = W.T
    p["b_comb"] = nrm(nk(), (1, H))
    p["wih"] = nrm(nk(), (N_LAYERS, H, G4))          # W_ih^T stacked per layer
    p["whh"] = nrm(nk(), (N_LAYERS, H, G4))          # W_hh^T stacked per layer
    p["b"] = nrm(nk(), (N_LAYERS, 1, G4))            # b_ih + b_hh combined
    p["wfc"] = nrm(nk(), (1, H))                     # torch fc.weight layout
    p["bfc"] = nrm(nk(), (1, 1))
    return p


# ------------------------------ pure-JAX reference ----------------------------------
def lstm_reference(params, test, question, tag, interaction):
    emb = jnp.concatenate([
        params["emb_interaction"][interaction],
        params["emb_test"][test],
        params["emb_question"][question],
        params["emb_tag"][tag],
    ], axis=-1)                                      # (B, S, E4)
    layer_in = emb @ params["w_comb"] + params["b_comb"]   # (B, S, H)

    for l in range(N_LAYERS):
        wih = params["wih"][l]
        whh = params["whh"][l]
        bias = params["b"][l]
        h = jnp.zeros((B, H), jnp.float32)
        c = jnp.zeros((B, H), jnp.float32)
        outs = []
        for t in range(S):
            g = layer_in[:, t, :] @ wih + h @ whh + bias
            i = jax.nn.sigmoid(g[:, 0:H])
            f = jax.nn.sigmoid(g[:, H:2 * H])
            gg = jnp.tanh(g[:, 2 * H:3 * H])
            o = jax.nn.sigmoid(g[:, 3 * H:4 * H])
            c = f * c + i * gg
            h = o * jnp.tanh(c)
            outs.append(h)
        layer_in = jnp.stack(outs, axis=1)           # (B, S, H)

    logits = layer_in @ params["wfc"].T + params["bfc"]    # (B, S, 1)
    return jax.nn.sigmoid(logits[..., 0])            # (B, S)


# ----------------------------------- main -------------------------------------------
if __name__ == "__main__":
    key = jax.random.PRNGKey(0)
    kp, k1, k2, k3, k4 = jax.random.split(key, 5)
    params = init_params(kp)

    test = jax.random.randint(k1, (B, S), 0, N_TEST + 1, dtype=jnp.int32)
    question = jax.random.randint(k2, (B, S), 0, N_QUESTIONS + 1, dtype=jnp.int32)
    tag = jax.random.randint(k3, (B, S), 0, N_TAG + 1, dtype=jnp.int32)
    interaction = jax.random.randint(k4, (B, S), 0, 3, dtype=jnp.int32)
    # NOTE: the torch forward also unpacks `_` and `mask`, but never uses them.

    out = lstm_forward(params, test, question, tag, interaction)
    out = jax.block_until_ready(out)
    assert out.shape == (B, S)

    ref = lstm_reference(params, test, question, tag, interaction)
    assert jnp.allclose(out, ref, atol=1e-4, rtol=1e-4), float(jnp.max(jnp.abs(out - ref)))

    print("KERNEL_OK")
</pallas_src>

<mosaic_0001>
module attributes {stable_mosaic.version = 11 : i64} {
  func.func @lstm_kernel(%arg0: memref<16x84xf32, #tpu.memory_space<vmem>>, %arg1: memref<84x64xf32, #tpu.memory_space<vmem>>, %arg2: memref<1x64xf32, #tpu.memory_space<vmem>>, %arg3: memref<2x64x256xf32, #tpu.memory_space<vmem>>, %arg4: memref<2x64x256xf32, #tpu.memory_space<vmem>>, %arg5: memref<2x1x256xf32, #tpu.memory_space<vmem>>, %arg6: memref<1x64xf32, #tpu.memory_space<vmem>>, %arg7: memref<1x1xf32, #tpu.memory_space<vmem>>, %arg8: memref<1x16xf32, #tpu.memory_space<vmem>>, %arg9: memref<16x64xf32, #tpu.memory_space<vmem>>) attributes {dimension_semantics = [], scalar_prefetch = 0 : i64, scratch_operands = 1 : i64, tpu.core_type = #tpu.core_type<tc>} {
    %c0 = arith.constant 0 : index
    %c0_0 = arith.constant 0 : index
    %0 = vector.load %arg0[%c0, %c0_0] : memref<16x84xf32, #tpu.memory_space<vmem>>, vector<16x84xf32>
    %c0_1 = arith.constant 0 : index
    %c0_2 = arith.constant 0 : index
    %1 = vector.load %arg1[%c0_1, %c0_2] : memref<84x64xf32, #tpu.memory_space<vmem>>, vector<84x64xf32>
    %cst = arith.constant dense<0.000000e+00> : vector<16x64xf32>
    %2 = tpu.matmul %0, %1, %cst {dimension_numbers = #tpu.dot_dimension_numbers<[1], [0], [0], [1], [0, 0, 1, 1], [], []>} : vector<16x84xf32>, vector<84x64xf32>, vector<16x64xf32> -> vector<16x64xf32>
    %c0_3 = arith.constant 0 : index
    %c0_4 = arith.constant 0 : index
    %3 = vector.load %arg2[%c0_3, %c0_4] : memref<1x64xf32, #tpu.memory_space<vmem>>, vector<1x64xf32>
    %4 = vector.broadcast %3 : vector<1x64xf32> to vector<16x64xf32>
    %5 = arith.addf %2, %4 : vector<16x64xf32>
    %c0_5 = arith.constant 0 : index
    %c0_6 = arith.constant 0 : index
    %6 = vector.load %arg9[%c0_5, %c0_6] : memref<16x64xf32, #tpu.memory_space<vmem>>, vector<16x64xf32>
    tpu.vector_store %arg9[%c0_5, %c0_6], %5 {strides = array<i32>} : memref<16x64xf32, #tpu.memory_space<vmem>>, vector<16x64xf32>,
    %c0_7 = arith.constant 0 : index
    %c0_8 = arith.constant 0 : index
    %c0_9 = arith.constant 0 : index
    %7 = vector.load %arg3[%c0_7, %c0_8, %c0_9] : memref<2x64x256xf32, #tpu.memory_space<vmem>>, vector<1x64x256xf32>
    %8 = vector.shape_cast %7 : vector<1x64x256xf32> to vector<64x256xf32>
    %c0_10 = arith.constant 0 : index
    %c0_11 = arith.constant 0 : index
    %c0_12 = arith.constant 0 : index
    %9 = vector.load %arg4[%c0_10, %c0_11, %c0_12] : memref<2x64x256xf32, #tpu.memory_space<vmem>>, vector<1x64x256xf32>
    %10 = vector.shape_cast %9 : vector<1x64x256xf32> to vector<64x256xf32>
    %c0_13 = arith.constant 0 : index
    %c0_14 = arith.constant 0 : index
    %c0_15 = arith.constant 0 : index
    %11 = vector.load %arg5[%c0_13, %c0_14, %c0_15] : memref<2x1x256xf32, #tpu.memory_space<vmem>>, vector<1x1x256xf32>
    %12 = vector.shape_cast %11 : vector<1x1x256xf32> to vector<1x256xf32>
    %c0_16 = arith.constant 0 : index
    %c0_17 = arith.constant 0 : index
    %13 = vector.load %arg9[%c0_16, %c0_17] : memref<16x64xf32, #tpu.memory_space<vmem>>, vector<16x64xf32>
    %cst_18 = arith.constant dense<0.000000e+00> : vector<16x256xf32>
    %14 = tpu.matmul %13, %8, %cst_18 {dimension_numbers = #tpu.dot_dimension_numbers<[1], [0], [0], [1], [0, 0, 1, 1], [], []>} : vector<16x64xf32>, vector<64x256xf32>, vector<16x256xf32> -> vector<16x256xf32>
    %15 = vector.broadcast %12 : vector<1x256xf32> to vector<16x256xf32>
    %16 = arith.addf %14, %15 : vector<16x256xf32>
    %cst_19 = arith.constant 0.000000e+00 : f32
    %17 = vector.broadcast %cst_19 : f32 to vector<2x64xf32>
    %cst_20 = arith.constant 0.000000e+00 : f32
    %18 = vector.broadcast %cst_20 : f32 to vector<2x64xf32>
    %19 = vector.extract_strided_slice %16 {offsets = [0, 0], sizes = [2, 256], strides = [1, 1]} : vector<16x256xf32> to vector<2x256xf32>
    %cst_21 = arith.constant dense<0.000000e+00> : vector<2x256xf32>
    %20 = tpu.matmul %17, %10, %cst_21 {dimension_numbers = #tpu.dot_dimension_numbers<[1], [0], [0], [1], [0, 0, 1, 1], [], []>} : vector<2x64xf32>, vector<64x256xf32>, vector<2x256xf32> -> vector<2x256xf32>
    %21 = arith.addf %19, %20 : vector<2x256xf32>
    %22 = vector.extract_strided_slice %21 {offsets = [0, 0], sizes = [2, 64], strides = [1, 1]} : vector<2x256xf32> to vector<2x64xf32>
    %23 = arith.negf %22 : vector<2x64xf32>
    %24 = math.exp %23 : vector<2x64xf32>
    %cst_22 = arith.constant 1.000000e+00 : f32
    %25 = vector.broadcast %cst_22 : f32 to vector<2x64xf32>
    %26 = arith.addf %25, %24 : vector<2x64xf32>
    %27 = arith.divf %25, %26 : vector<2x64xf32>
    %28 = vector.extract_strided_slice %21 {offsets = [0, 64], sizes = [2, 64], strides = [1, 1]} : vector<2x256xf32> to vector<2x64xf32>
    %29 = arith.negf %28 : vector<2x64xf32>
    %30 = math.exp %29 : vector<2x64xf32>
    %cst_23 = arith.constant 1.000000e+00 : f32
    %31 = vector.broadcast %cst_23 : f32 to vector<2x64xf32>
    %32 = arith.addf %31, %30 : vector<2x64xf32>
    %33 = arith.divf %31, %32 : vector<2x64xf32>
    %34 = vector.extract_strided_slice %21 {offsets = [0, 128], sizes = [2, 64], strides = [1, 1]} : vector<2x256xf32> to vector<2x64xf32>
    %35 = math.tanh %34 : vector<2x64xf32>
    %36 = vector.extract_strided_slice %21 {offsets = [0, 192], sizes = [2, 64], strides = [1, 1]} : vector<2x256xf32> to vector<2x64xf32>
    %37 = arith.negf %36 : vector<2x64xf32>
    %38 = math.exp %37 : vector<2x64xf32>
    %cst_24 = arith.constant 1.000000e+00 : f32
    %39 = vector.broadcast %cst_24 : f32 to vector<2x64xf32>
    %40 = arith.addf %39, %38 : vector<2x64xf32>
    %41 = arith.divf %39, %40 : vector<2x64xf32>
    %42 = arith.mulf %33, %18 : vector<2x64xf32>
    %43 = arith.mulf %27, %35 : vector<2x64xf32>
    %44 = arith.addf %42, %43 : vector<2x64xf32>
    %45 = math.tanh %44 : vector<2x64xf32>
    %46 = arith.mulf %41, %45 : vector<2x64xf32>
    %c0_25 = arith.constant 0 : index
    %c0_26 = arith.constant 0 : index
    %47 = vector.load %arg9[%c0_25, %c0_26] : memref<16x64xf32, #tpu.memory_space<vmem>>, vector<2x64xf32>
    tpu.vector_store %arg9[%c0_25, %c0_26], %46 {strides = array<i32>} : memref<16x64xf32, #tpu.memory_space<vmem>>, vector<2x64xf32>,
    %48 = vector.extract_strided_slice %16 {offsets = [2, 0], sizes = [2, 256], strides = [1, 1]} : vector<16x256xf32> to vector<2x256xf32>
    %cst_27 = arith.constant dense<0.000000e+00> : vector<2x256xf32>
    %49 = tpu.matmul %46, %10, %cst_27 {dimension_numbers = #tpu.dot_dimension_numbers<[1], [0], [0], [1], [0, 0, 1, 1], [], []>} : vector<2x64xf32>, vector<64x256xf32>, vector<2x256xf32> -> vector<2x256xf32>
    %50 = arith.addf %48, %49 : vector<2x256xf32>
    %51 = vector.extract_strided_slice %50 {offsets = [0, 0], sizes = [2, 64], strides = [1, 1]} : vector<2x256xf32> to vector<2x64xf32>
    %52 = arith.negf %51 : vector<2x64xf32>
    %53 = math.exp %52 : vector<2x64xf32>
    %cst_28 = arith.constant 1.000000e+00 : f32
    %54 = vector.broadcast %cst_28 : f32 to vector<2x64xf32>
    %55 = arith.addf %54, %53 : vector<2x64xf32>
    %56 = arith.divf %54, %55 : vector<2x64xf32>
    %57 = vector.extract_strided_slice %50 {offsets = [0, 64], sizes = [2, 64], strides = [1, 1]} : vector<2x256xf32> to vector<2x64xf32>
    %58 = arith.negf %57 : vector<2x64xf32>
    %59 = math.exp %58 : vector<2x64xf32>
    %cst_29 = arith.constant 1.000000e+00 : f32
    %60 = vector.broadcast %cst_29 : f32 to vector<2x64xf32>
    %61 = arith.addf %60, %59 : vector<2x64xf32>
    %62 = arith.divf %60, %61 : vector<2x64xf32>
    %63 = vector.extract_strided_slice %50 {offsets = [0, 128], sizes = [2, 64], strides = [1, 1]} : vector<2x256xf32> to vector<2x64xf32>
    %64 = math.tanh %63 : vector<2x64xf32>
    %65 = vector.extract_strided_slice %50 {offsets = [0, 192], sizes = [2, 64], strides = [1, 1]} : vector<2x256xf32> to vector<2x64xf32>
    %66 = arith.negf %65 : vector<2x64xf32>
    %67 = math.exp %66 : vector<2x64xf32>
    %cst_30 = arith.constant 1.000000e+00 : f32
    %68 = vector.broadcast %cst_30 : f32 to vector<2x64xf32>
    %69 = arith.addf %68, %67 : vector<2x64xf32>
    %70 = arith.divf %68, %69 : vector<2x64xf32>
    %71 = arith.mulf %62, %44 : vector<2x64xf32>
    %72 = arith.mulf %56, %64 : vector<2x64xf32>
    %73 = arith.addf %71, %72 : vector<2x64xf32>
    %74 = math.tanh %73 : vector<2x64xf32>
    %75 = arith.mulf %70, %74 : vector<2x64xf32>
    %c2 = arith.constant 2 : index
    %c0_31 = arith.constant 0 : index
    %76 = vector.load %arg9[%c2, %c0_31] : memref<16x64xf32, #tpu.memory_space<vmem>>, vector<2x64xf32>
    tpu.vector_store %arg9[%c2, %c0_31], %75 {strides = array<i32>} : memref<16x64xf32, #tpu.memory_space<vmem>>, vector<2x64xf32>,
    %77 = vector.extract_strided_slice %16 {offsets = [4, 0], sizes = [2, 256], strides = [1, 1]} : vector<16x256xf32> to vector<2x256xf32>
    %cst_32 = arith.constant dense<0.000000e+00> : vector<2x256xf32>
    %78 = tpu.matmul %75, %10, %cst_32 {dimension_numbers = #tpu.dot_dimension_numbers<[1], [0], [0], [1], [0, 0, 1, 1], [], []>} : vector<2x64xf32>, vector<64x256xf32>, vector<2x256xf32> -> vector<2x256xf32>
    %79 = arith.addf %77, %78 : vector<2x256xf32>
    %80 = vector.extract_strided_slice %79 {offsets = [0, 0], sizes = [2, 64], strides = [1, 1]} : vector<2x256xf32> to vector<2x64xf32>
    %81 = arith.negf %80 : vector<2x64xf32>
    %82 = math.exp %81 : vector<2x64xf32>
    %cst_33 = arith.constant 1.000000e+00 : f32
    %83 = vector.broadcast %cst_33 : f32 to vector<2x64xf32>
    %84 = arith.addf %83, %82 : vector<2x64xf32>
    %85 = arith.divf %83, %84 : vector<2x64xf32>
    %86 = vector.extract_strided_slice %79 {offsets = [0, 64], sizes = [2, 64], strides = [1, 1]} : vector<2x256xf32> to vector<2x64xf32>
    %87 = arith.negf %86 : vector<2x64xf32>
    %88 = math.exp %87 : vector<2x64xf32>
    %cst_34 = arith.constant 1.000000e+00 : f32
    %89 = vector.broadcast %cst_34 : f32 to vector<2x64xf32>
    %90 = arith.addf %89, %88 : vector<2x64xf32>
    %91 = arith.divf %89, %90 : vector<2x64xf32>
    %92 = vector.extract_strided_slice %79 {offsets = [0, 128], sizes = [2, 64], strides = [1, 1]} : vector<2x256xf32> to vector<2x64xf32>
    %93 = math.tanh %92 : vector<2x64xf32>
    %94 = vector.extract_strided_slice %79 {offsets = [0, 192], sizes = [2, 64], strides = [1, 1]} : vector<2x256xf32> to vector<2x64xf32>
    %95 = arith.negf %94 : vector<2x64xf32>
    %96 = math.exp %95 : vector<2x64xf32>
    %cst_35 = arith.constant 1.000000e+00 : f32
    %97 = vector.broadcast %cst_35 : f32 to vector<2x64xf32>
    %98 = arith.addf %97, %96 : vector<2x64xf32>
    %99 = arith.divf %97, %98 : vector<2x64xf32>
    %100 = arith.mulf %91, %73 : vector<2x64xf32>
    %101 = arith.mulf %85, %93 : vector<2x64xf32>
    %102 = arith.addf %100, %101 : vector<2x64xf32>
    %103 = math.tanh %102 : vector<2x64xf32>
    %104 = arith.mulf %99, %103 : vector<2x64xf32>
    %c4 = arith.constant 4 : index
    %c0_36 = arith.constant 0 : index
    %105 = vector.load %arg9[%c4, %c0_36] : memref<16x64xf32, #tpu.memory_space<vmem>>, vector<2x64xf32>
    tpu.vector_store %arg9[%c4, %c0_36], %104 {strides = array<i32>} : memref<16x64xf32, #tpu.memory_space<vmem>>, vector<2x64xf32>,
    %106 = vector.extract_strided_slice %16 {offsets = [6, 0], sizes = [2, 256], strides = [1, 1]} : vector<16x256xf32> to vector<2x256xf32>
    %cst_37 = arith.constant dense<0.000000e+00> : vector<2x256xf32>
    %107 = tpu.matmul %104, %10, %cst_37 {dimension_numbers = #tpu.dot_dimension_numbers<[1], [0], [0], [1], [0, 0, 1, 1], [], []>} : vector<2x64xf32>, vector<64x256xf32>, vector<2x256xf32> -> vector<2x256xf32>
    %108 = arith.addf %106, %107 : vector<2x256xf32>
    %109 = vector.extract_strided_slice %108 {offsets = [0, 0], sizes = [2, 64], strides = [1, 1]} : vector<2x256xf32> to vector<2x64xf32>
    %110 = arith.negf %109 : vector<2x64xf32>
    %111 = math.exp %110 : vector<2x64xf32>
    %cst_38 = arith.constant 1.000000e+00 : f32
    %112 = vector.broadcast %cst_38 : f32 to vector<2x64xf32>
    %113 = arith.addf %112, %111 : vector<2x64xf32>
    %114 = arith.divf %112, %113 : vector<2x64xf32>
    %115 = vector.extract_strided_slice %108 {offsets = [0, 64], sizes = [2, 64], strides = [1, 1]} : vector<2x256xf32> to vector<2x64xf32>
    %116 = arith.negf %115 : vector<2x64xf32>
    %117 = math.exp %116 : vector<2x64xf32>
    %cst_39 = arith.constant 1.000000e+00 : f32
    %118 = vector.broadcast %cst_39 : f32 to vector<2x64xf32>
    %119 = arith.addf %118, %117 : vector<2x64xf32>
    %120 = arith.divf %118, %119 : vector<2x64xf32>
    %121 = vector.extract_strided_slice %108 {offsets = [0, 128], sizes = [2, 64], strides = [1, 1]} : vector<2x256xf32> to vector<2x64xf32>
    %122 = math.tanh %121 : vector<2x64xf32>
    %123 = vector.extract_strided_slice %108 {offsets = [0, 192], sizes = [2, 64], strides = [1, 1]} : vector<2x256xf32> to vector<2x64xf32>
    %124 = arith.negf %123 : vector<2x64xf32>
    %125 = math.exp %124 : vector<2x64xf32>
    %cst_40 = arith.constant 1.000000e+00 : f32
    %126 = vector.broadcast %cst_40 : f32 to vector<2x64xf32>
    %127 = arith.addf %126, %125 : vector<2x64xf32>
    %128 = arith.divf %126, %127 : vector<2x64xf32>
    %129 = arith.mulf %120, %102 : vector<2x64xf32>
    %130 = arith.mulf %114, %122 : vector<2x64xf32>
    %131 = arith.addf %129, %130 : vector<2x64xf32>
    %132 = math.tanh %131 : vector<2x64xf32>
    %133 = arith.mulf %128, %132 : vector<2x64xf32>
    %c6 = arith.constant 6 : index
    %c0_41 = arith.constant 0 : index
    %134 = vector.load %arg9[%c6, %c0_41] : memref<16x64xf32, #tpu.memory_space<vmem>>, vector<2x64xf32>
    tpu.vector_store %arg9[%c6, %c0_41], %133 {strides = array<i32>} : memref<16x64xf32, #tpu.memory_space<vmem>>, vector<2x64xf32>,
    %135 = vector.extract_strided_slice %16 {offsets = [8, 0], sizes = [2, 256], strides = [1, 1]} : vector<16x256xf32> to vector<2x256xf32>
    %cst_42 = arith.constant dense<0.000000e+00> : vector<2x256xf32>
    %136 = tpu.matmul %133, %10, %cst_42 {dimension_numbers = #tpu.dot_dimension_numbers<[1], [0], [0], [1], [0, 0, 1, 1], [], []>} : vector<2x64xf32>, vector<64x256xf32>, vector<2x256xf32> -> vector<2x256xf32>
    %137 = arith.addf %135, %136 : vector<2x256xf32>
    %138 = vector.extract_strided_slice %137 {offsets = [0, 0], sizes = [2, 64], strides = [1, 1]} : vector<2x256xf32> to vector<2x64xf32>
    %139 = arith.negf %138 : vector<2x64xf32>
    %140 = math.exp %139 : vector<2x64xf32>
    %cst_43 = arith.constant 1.000000e+00 : f32
    %141 = vector.broadcast %cst_43 : f32 to vector<2x64xf32>
    %142 = arith.addf %141, %140 : vector<2x64xf32>
    %143 = arith.divf %141, %142 : vector<2x64xf32>
    %144 = vector.extract_strided_slice %137 {offsets = [0, 64], sizes = [2, 64], strides = [1, 1]} : vector<2x256xf32> to vector<2x64xf32>
    %145 = arith.negf %144 : vector<2x64xf32>
    %146 = math.exp %145 : vector<2x64xf32>
    %cst_44 = arith.constant 1.000000e+00 : f32
    %147 = vector.broadcast %cst_44 : f32 to vector<2x64xf32>
    %148 = arith.addf %147, %146 : vector<2x64xf32>
    %149 = arith.divf %147, %148 : vector<2x64xf32>
    %150 = vector.extract_strided_slice %137 {offsets = [0, 128], sizes = [2, 64], strides = [1, 1]} : vector<2x256xf32> to vector<2x64xf32>
    %151 = math.tanh %150 : vector<2x64xf32>
    %152 = vector.extract_strided_slice %137 {offsets = [0, 192], sizes = [2, 64], strides = [1, 1]} : vector<2x256xf32> to vector<2x64xf32>
    %153 = arith.negf %152 : vector<2x64xf32>
    %154 = math.exp %153 : vector<2x64xf32>
    %cst_45 = arith.constant 1.000000e+00 : f32
    %155 = vector.broadcast %cst_45 : f32 to vector<2x64xf32>
    %156 = arith.addf %155, %154 : vector<2x64xf32>
    %157 = arith.divf %155, %156 : vector<2x64xf32>
    %158 = arith.mulf %149, %131 : vector<2x64xf32>
    %159 = arith.mulf %143, %151 : vector<2x64xf32>
    %160 = arith.addf %158, %159 : vector<2x64xf32>
    %161 = math.tanh %160 : vector<2x64xf32>
    %162 = arith.mulf %157, %161 : vector<2x64xf32>
    %c8 = arith.constant 8 : index
    %c0_46 = arith.constant 0 : index
    %163 = vector.load %arg9[%c8, %c0_46] : memref<16x64xf32, #tpu.memory_space<vmem>>, vector<2x64xf32>
    tpu.vector_store %arg9[%c8, %c0_46], %162 {strides = array<i32>} : memref<16x64xf32, #tpu.memory_space<vmem>>, vector<2x64xf32>,
    %164 = vector.extract_strided_slice %16 {offsets = [10, 0], sizes = [2, 256], strides = [1, 1]} : vector<16x256xf32> to vector<2x256xf32>
    %cst_47 = arith.constant dense<0.000000e+00> : vector<2x256xf32>
    %165 = tpu.matmul %162, %10, %cst_47 {dimension_numbers = #tpu.dot_dimension_numbers<[1], [0], [0], [1], [0, 0, 1, 1], [], []>} : vector<2x64xf32>, vector<64x256xf32>, vector<2x256xf32> -> vector<2x256xf32>
    %166 = arith.addf %164, %165 : vector<2x256xf32>
    %167 = vector.extract_strided_slice %166 {offsets = [0, 0], sizes = [2, 64], strides = [1, 1]} : vector<2x256xf32> to vector<2x64xf32>
    %168 = arith.negf %167 : vector<2x64xf32>
    %169 = math.exp %168 : vector<2x64xf32>
    %cst_48 = arith.constant 1.000000e+00 : f32
    %170 = vector.broadcast %cst_48 : f32 to vector<2x64xf32>
    %171 = arith.addf %170, %169 : vector<2x64xf32>
    %172 = arith.divf %170, %171 : vector<2x64xf32>
    %173 = vector.extract_strided_slice %166 {offsets = [0, 64], sizes = [2, 64], strides = [1, 1]} : vector<2x256xf32> to vector<2x64xf32>
    %174 = arith.negf %173 : vector<2x64xf32>
    %175 = math.exp %174 : vector<2x64xf32>
    %cst_49 = arith.constant 1.000000e+00 : f32
    %176 = vector.broadcast %cst_49 : f32 to vector<2x64xf32>
    %177 = arith.addf %176, %175 : vector<2x64xf32>
    %178 = arith.divf %176, %177 : vector<2x64xf32>
    %179 = vector.extract_strided_slice %166 {offsets = [0, 128], sizes = [2, 64], strides = [1, 1]} : vector<2x256xf32> to vector<2x64xf32>
    %180 = math.tanh %179 : vector<2x64xf32>
    %181 = vector.extract_strided_slice %166 {offsets = [0, 192], sizes = [2, 64], strides = [1, 1]} : vector<2x256xf32> to vector<2x64xf32>
    %182 = arith.negf %181 : vector<2x64xf32>
    %183 = math.exp %182 : vector<2x64xf32>
    %cst_50 = arith.constant 1.000000e+00 : f32
    %184 = vector.broadcast %cst_50 : f32 to vector<2x64xf32>
    %185 = arith.addf %184, %183 : vector<2x64xf32>
    %186 = arith.divf %184, %185 : vector<2x64xf32>
    %187 = arith.mulf %178, %160 : vector<2x64xf32>
    %188 = arith.mulf %172, %180 : vector<2x64xf32>
    %189 = arith.addf %187, %188 : vector<2x64xf32>
    %190 = math.tanh %189 : vector<2x64xf32>
    %191 = arith.mulf %186, %190 : vector<2x64xf32>
    %c10 = arith.constant 10 : index
    %c0_51 = arith.constant 0 : index
    %192 = vector.load %arg9[%c10, %c0_51] : memref<16x64xf32, #tpu.memory_space<vmem>>, vector<2x64xf32>
    tpu.vector_store %arg9[%c10, %c0_51], %191 {strides = array<i32>} : memref<16x64xf32, #tpu.memory_space<vmem>>, vector<2x64xf32>,
    %193 = vector.extract_strided_slice %16 {offsets = [12, 0], sizes = [2, 256], strides = [1, 1]} : vector<16x256xf32> to vector<2x256xf32>
    %cst_52 = arith.constant dense<0.000000e+00> : vector<2x256xf32>
    %194 = tpu.matmul %191, %10, %cst_52 {dimension_numbers = #tpu.dot_dimension_numbers<[1], [0], [0], [1], [0, 0, 1, 1], [], []>} : vector<2x64xf32>, vector<64x256xf32>, vector<2x256xf32> -> vector<2x256xf32>
    %195 = arith.addf %193, %194 : vector<2x256xf32>
    %196 = vector.extract_strided_slice %195 {offsets = [0, 0], sizes = [2, 64], strides = [1, 1]} : vector<2x256xf32> to vector<2x64xf32>
    %197 = arith.negf %196 : vector<2x64xf32>
    %198 = math.exp %197 : vector<2x64xf32>
    %cst_53 = arith.constant 1.000000e+00 : f32
    %199 = vector.broadcast %cst_53 : f32 to vector<2x64xf32>
    %200 = arith.addf %199, %198 : vector<2x64xf32>
    %201 = arith.divf %199, %200 : vector<2x64xf32>
    %202 = vector.extract_strided_slice %195 {offsets = [0, 64], sizes = [2, 64], strides = [1, 1]} : vector<2x256xf32> to vector<2x64xf32>
    %203 = arith.negf %202 : vector<2x64xf32>
    %204 = math.exp %203 : vector<2x64xf32>
    %cst_54 = arith.constant 1.000000e+00 : f32
    %205 = vector.broadcast %cst_54 : f32 to vector<2x64xf32>
    %206 = arith.addf %205, %204 : vector<2x64xf32>
    %207 = arith.divf %205, %206 : vector<2x64xf32>
    %208 = vector.extract_strided_slice %195 {offsets = [0, 128], sizes = [2, 64], strides = [1, 1]} : vector<2x256xf32> to vector<2x64xf32>
    %209 = math.tanh %208 : vector<2x64xf32>
    %210 = vector.extract_strided_slice %195 {offsets = [0, 192], sizes = [2, 64], strides = [1, 1]} : vector<2x256xf32> to vector<2x64xf32>
    %211 = arith.negf %210 : vector<2x64xf32>
    %212 = math.exp %211 : vector<2x64xf32>
    %cst_55 = arith.constant 1.000000e+00 : f32
    %213 = vector.broadcast %cst_55 : f32 to vector<2x64xf32>
    %214 = arith.addf %213, %212 : vector<2x64xf32>
    %215 = arith.divf %213, %214 : vector<2x64xf32>
    %216 = arith.mulf %207, %189 : vector<2x64xf32>
    %217 = arith.mulf %201, %209 : vector<2x64xf32>
    %218 = arith.addf %216, %217 : vector<2x64xf32>
    %219 = math.tanh %218 : vector<2x64xf32>
    %220 = arith.mulf %215, %219 : vector<2x64xf32>
    %c12 = arith.constant 12 : index
    %c0_56 = arith.constant 0 : index
    %221 = vector.load %arg9[%c12, %c0_56] : memref<16x64xf32, #tpu.memory_space<vmem>>, vector<2x64xf32>
    tpu.vector_store %arg9[%c12, %c0_56], %220 {strides = array<i32>} : memref<16x64xf32, #tpu.memory_space<vmem>>, vector<2x64xf32>,
    %222 = vector.extract_strided_slice %16 {offsets = [14, 0], sizes = [2, 256], strides = [1, 1]} : vector<16x256xf32> to vector<2x256xf32>
    %cst_57 = arith.constant dense<0.000000e+00> : vector<2x256xf32>
    %223 = tpu.matmul %220, %10, %cst_57 {dimension_numbers = #tpu.dot_dimension_numbers<[1], [0], [0], [1], [0, 0, 1, 1], [], []>} : vector<2x64xf32>, vector<64x256xf32>, vector<2x256xf32> -> vector<2x256xf32>
    %224 = arith.addf %222, %223 : vector<2x256xf32>
    %225 = vector.extract_strided_slice %224 {offsets = [0, 0], sizes = [2, 64], strides = [1, 1]} : vector<2x256xf32> to vector<2x64xf32>
    %226 = arith.negf %225 : vector<2x64xf32>
    %227 = math.exp %226 : vector<2x64xf32>
    %cst_58 = arith.constant 1.000000e+00 : f32
    %228 = vector.broadcast %cst_58 : f32 to vector<2x64xf32>
    %229 = arith.addf %228, %227 : vector<2x64xf32>
    %230 = arith.divf %228, %229 : vector<2x64xf32>
    %231 = vector.extract_strided_slice %224 {offsets = [0, 64], sizes = [2, 64], strides = [1, 1]} : vector<2x256xf32> to vector<2x64xf32>
    %232 = arith.negf %231 : vector<2x64xf32>
    %233 = math.exp %232 : vector<2x64xf32>
    %cst_59 = arith.constant 1.000000e+00 : f32
    %234 = vector.broadcast %cst_59 : f32 to vector<2x64xf32>
    %235 = arith.addf %234, %233 : vector<2x64xf32>
    %236 = arith.divf %234, %235 : vector<2x64xf32>
    %237 = vector.extract_strided_slice %224 {offsets = [0, 128], sizes = [2, 64], strides = [1, 1]} : vector<2x256xf32> to vector<2x64xf32>
    %238 = math.tanh %237 : vector<2x64xf32>
    %239 = vector.extract_strided_slice %224 {offsets = [0, 192], sizes = [2, 64], strides = [1, 1]} : vector<2x256xf32> to vector<2x64xf32>
    %240 = arith.negf %239 : vector<2x64xf32>
    %241 = math.exp %240 : vector<2x64xf32>
    %cst_60 = arith.constant 1.000000e+00 : f32
    %242 = vector.broadcast %cst_60 : f32 to vector<2x64xf32>
    %243 = arith.addf %242, %241 : vector<2x64xf32>
    %244 = arith.divf %242, %243 : vector<2x64xf32>
    %245 = arith.mulf %236, %218 : vector<2x64xf32>
    %246 = arith.mulf %230, %238 : vector<2x64xf32>
    %247 = arith.addf %245, %246 : vector<2x64xf32>
    %248 = math.tanh %247 : vector<2x64xf32>
    %249 = arith.mulf %244, %248 : vector<2x64xf32>
    %c14 = arith.constant 14 : index
    %c0_61 = arith.constant 0 : index
    %250 = vector.load %arg9[%c14, %c0_61] : memref<16x64xf32, #tpu.memory_space<vmem>>, vector<2x64xf32>
    tpu.vector_store %arg9[%c14, %c0_61], %249 {strides = array<i32>} : memref<16x64xf32, #tpu.memory_space<vmem>>, vector<2x64xf32>,
    %c1 = arith.constant 1 : index
    %c0_62 = arith.constant 0 : index
    %c0_63 = arith.constant 0 : index
    %251 = vector.load %arg3[%c1, %c0_62, %c0_63] : memref<2x64x256xf32, #tpu.memory_space<vmem>>, vector<1x64x256xf32>
    %252 = vector.shape_cast %251 : vector<1x64x256xf32> to vector<64x256xf32>
    %c1_64 = arith.constant 1 : index
    %c0_65 = arith.constant 0 : index
    %c0_66 = arith.constant 0 : index
    %253 = vector.load %arg4[%c1_64, %c0_65, %c0_66] : memref<2x64x256xf32, #tpu.memory_space<vmem>>, vector<1x64x256xf32>
    %254 = vector.shape_cast %253 : vector<1x64x256xf32> to vector<64x256xf32>
    %c1_67 = arith.constant 1 : index
    %c0_68 = arith.constant 0 : index
    %c0_69 = arith.constant 0 : index
    %255 = vector.load %arg5[%c1_67, %c0_68, %c0_69] : memref<2x1x256xf32, #tpu.memory_space<vmem>>, vector<1x1x256xf32>
    %256 = vector.shape_cast %255 : vector<1x1x256xf32> to vector<1x256xf32>
    %c0_70 = arith.constant 0 : index
    %c0_71 = arith.constant 0 : index
    %257 = vector.load %arg9[%c0_70, %c0_71] : memref<16x64xf32, #tpu.memory_space<vmem>>, vector<16x64xf32>
    %cst_72 = arith.constant dense<0.000000e+00> : vector<16x256xf32>
    %258 = tpu.matmul %257, %252, %cst_72 {dimension_numbers = #tpu.dot_dimension_numbers<[1], [0], [0], [1], [0, 0, 1, 1], [], []>} : vector<16x64xf32>, vector<64x256xf32>, vector<16x256xf32> -> vector<16x256xf32>
    %259 = vector.broadcast %256 : vector<1x256xf32> to vector<16x256xf32>
    %260 = arith.addf %258, %259 : vector<16x256xf32>
    %cst_73 = arith.constant 0.000000e+00 : f32
    %261 = vector.broadcast %cst_73 : f32 to vector<2x64xf32>
    %cst_74 = arith.constant 0.000000e+00 : f32
    %262 = vector.broadcast %cst_74 : f32 to vector<2x64xf32>
    %263 = vector.extract_strided_slice %260 {offsets = [0, 0], sizes = [2, 256], strides = [1, 1]} : vector<16x256xf32> to vector<2x256xf32>
    %cst_75 = arith.constant dense<0.000000e+00> : vector<2x256xf32>
    %264 = tpu.matmul %261, %254, %cst_75 {dimension_numbers = #tpu.dot_dimension_numbers<[1], [0], [0], [1], [0, 0, 1, 1], [], []>} : vector<2x64xf32>, vector<64x256xf32>, vector<2x256xf32> -> vector<2x256xf32>
    %265 = arith.addf %263, %264 : vector<2x256xf32>
    %266 = vector.extract_strided_slice %265 {offsets = [0, 0], sizes = [2, 64], strides = [1, 1]} : vector<2x256xf32> to vector<2x64xf32>
    %267 = arith.negf %266 : vector<2x64xf32>
    %268 = math.exp %267 : vector<2x64xf32>
    %cst_76 = arith.constant 1.000000e+00 : f32
    %269 = vector.broadcast %cst_76 : f32 to vector<2x64xf32>
    %270 = arith.addf %269, %268 : vector<2x64xf32>
    %271 = arith.divf %269, %270 : vector<2x64xf32>
    %272 = vector.extract_strided_slice %265 {offsets = [0, 64], sizes = [2, 64], strides = [1, 1]} : vector<2x256xf32> to vector<2x64xf32>
    %273 = arith.negf %272 : vector<2x64xf32>
    %274 = math.exp %273 : vector<2x64xf32>
    %cst_77 = arith.constant 1.000000e+00 : f32
    %275 = vector.broadcast %cst_77 : f32 to vector<2x64xf32>
    %276 = arith.addf %275, %274 : vector<2x64xf32>
    %277 = arith.divf %275, %276 : vector<2x64xf32>
    %278 = vector.extract_strided_slice %265 {offsets = [0, 128], sizes = [2, 64], strides = [1, 1]} : vector<2x256xf32> to vector<2x64xf32>
    %279 = math.tanh %278 : vector<2x64xf32>
    %280 = vector.extract_strided_slice %265 {offsets = [0, 192], sizes = [2, 64], strides = [1, 1]} : vector<2x256xf32> to vector<2x64xf32>
    %281 = arith.negf %280 : vector<2x64xf32>
    %282 = math.exp %281 : vector<2x64xf32>
    %cst_78 = arith.constant 1.000000e+00 : f32
    %283 = vector.broadcast %cst_78 : f32 to vector<2x64xf32>
    %284 = arith.addf %283, %282 : vector<2x64xf32>
    %285 = arith.divf %283, %284 : vector<2x64xf32>
    %286 = arith.mulf %277, %262 : vector<2x64xf32>
    %287 = arith.mulf %271, %279 : vector<2x64xf32>
    %288 = arith.addf %286, %287 : vector<2x64xf32>
    %289 = math.tanh %288 : vector<2x64xf32>
    %290 = arith.mulf %285, %289 : vector<2x64xf32>
    %c0_79 = arith.constant 0 : index
    %c0_80 = arith.constant 0 : index
    %291 = vector.load %arg9[%c0_79, %c0_80] : memref<16x64xf32, #tpu.memory_space<vmem>>, vector<2x64xf32>
    tpu.vector_store %arg9[%c0_79, %c0_80], %290 {strides = array<i32>} : memref<16x64xf32, #tpu.memory_space<vmem>>, vector<2x64xf32>,
    %292 = vector.extract_strided_slice %260 {offsets = [2, 0], sizes = [2, 256], strides = [1, 1]} : vector<16x256xf32> to vector<2x256xf32>
    %cst_81 = arith.constant dense<0.000000e+00> : vector<2x256xf32>
    %293 = tpu.matmul %290, %254, %cst_81 {dimension_numbers = #tpu.dot_dimension_numbers<[1], [0], [0], [1], [0, 0, 1, 1], [], []>} : vector<2x64xf32>, vector<64x256xf32>, vector<2x256xf32> -> vector<2x256xf32>
    %294 = arith.addf %292, %293 : vector<2x256xf32>
    %295 = vector.extract_strided_slice %294 {offsets = [0, 0], sizes = [2, 64], strides = [1, 1]} : vector<2x256xf32> to vector<2x64xf32>
    %296 = arith.negf %295 : vector<2x64xf32>
    %297 = math.exp %296 : vector<2x64xf32>
    %cst_82 = arith.constant 1.000000e+00 : f32
    %298 = vector.broadcast %cst_82 : f32 to vector<2x64xf32>
    %299 = arith.addf %298, %297 : vector<2x64xf32>
    %300 = arith.divf %298, %299 : vector<2x64xf32>
    %301 = vector.extract_strided_slice %294 {offsets = [0, 64], sizes = [2, 64], strides = [1, 1]} : vector<2x256xf32> to vector<2x64xf32>
    %302 = arith.negf %301 : vector<2x64xf32>
    %303 = math.exp %302 : vector<2x64xf32>
    %cst_83 = arith.constant 1.000000e+00 : f32
    %304 = vector.broadcast %cst_83 : f32 to vector<2x64xf32>
    %305 = arith.addf %304, %303 : vector<2x64xf32>
    %306 = arith.divf %304, %305 : vector<2x64xf32>
    %307 = vector.extract_strided_slice %294 {offsets = [0, 128], sizes = [2, 64], strides = [1, 1]} : vector<2x256xf32> to vector<2x64xf32>
    %308 = math.tanh %307 : vector<2x64xf32>
    %309 = vector.extract_strided_slice %294 {offsets = [0, 192], sizes = [2, 64], strides = [1, 1]} : vector<2x256xf32> to vector<2x64xf32>
    %310 = arith.negf %309 : vector<2x64xf32>
    %311 = math.exp %310 : vector<2x64xf32>
    %cst_84 = arith.constant 1.000000e+00 : f32
    %312 = vector.broadcast %cst_84 : f32 to vector<2x64xf32>
    %313 = arith.addf %312, %311 : vector<2x64xf32>
    %314 = arith.divf %312, %313 : vector<2x64xf32>
    %315 = arith.mulf %306, %288 : vector<2x64xf32>
    %316 = arith.mulf %300, %308 : vector<2x64xf32>
    %317 = arith.addf %315, %316 : vector<2x64xf32>
    %318 = math.tanh %317 : vector<2x64xf32>
    %319 = arith.mulf %314, %318 : vector<2x64xf32>
    %c2_85 = arith.constant 2 : index
    %c0_86 = arith.constant 0 : index
    %320 = vector.load %arg9[%c2_85, %c0_86] : memref<16x64xf32, #tpu.memory_space<vmem>>, vector<2x64xf32>
    tpu.vector_store %arg9[%c2_85, %c0_86], %319 {strides = array<i32>} : memref<16x64xf32, #tpu.memory_space<vmem>>, vector<2x64xf32>,
    %321 = vector.extract_strided_slice %260 {offsets = [4, 0], sizes = [2, 256], strides = [1, 1]} : vector<16x256xf32> to vector<2x256xf32>
    %cst_87 = arith.constant dense<0.000000e+00> : vector<2x256xf32>
    %322 = tpu.matmul %319, %254, %cst_87 {dimension_numbers = #tpu.dot_dimension_numbers<[1], [0], [0], [1], [0, 0, 1, 1], [], []>} : vector<2x64xf32>, vector<64x256xf32>, vector<2x256xf32> -> vector<2x256xf32>
    %323 = arith.addf %321, %322 : vector<2x256xf32>
    %324 = vector.extract_strided_slice %323 {offsets = [0, 0], sizes = [2, 64], strides = [1, 1]} : vector<2x256xf32> to vector<2x64xf32>
    %325 = arith.negf %324 : vector<2x64xf32>
    %326 = math.exp %325 : vector<2x64xf32>
    %cst_88 = arith.constant 1.000000e+00 : f32
    %327 = vector.broadcast %cst_88 : f32 to vector<2x64xf32>
    %328 = arith.addf %327, %326 : vector<2x64xf32>
    %329 = arith.divf %327, %328 : vector<2x64xf32>
    %330 = vector.extract_strided_slice %323 {offsets = [0, 64], sizes = [2, 64], strides = [1, 1]} : vector<2x256xf32> to vector<2x64xf32>
    %331 = arith.negf %330 : vector<2x64xf32>
    %332 = math.exp %331 : vector<2x64xf32>
    %cst_89 = arith.constant 1.000000e+00 : f32
    %333 = vector.broadcast %cst_89 : f32 to vector<2x64xf32>
    %334 = arith.addf %333, %332 : vector<2x64xf32>
    %335 = arith.divf %333, %334 : vector<2x64xf32>
    %336 = vector.extract_strided_slice %323 {offsets = [0, 128], sizes = [2, 64], strides = [1, 1]} : vector<2x256xf32> to vector<2x64xf32>
    %337 = math.tanh %336 : vector<2x64xf32>
    %338 = vector.extract_strided_slice %323 {offsets = [0, 192], sizes = [2, 64], strides = [1, 1]} : vector<2x256xf32> to vector<2x64xf32>
    %339 = arith.negf %338 : vector<2x64xf32>
    %340 = math.exp %339 : vector<2x64xf32>
    %cst_90 = arith.constant 1.000000e+00 : f32
    %341 = vector.broadcast %cst_90 : f32 to vector<2x64xf32>
    %342 = arith.addf %341, %340 : vector<2x64xf32>
    %343 = arith.divf %341, %342 : vector<2x64xf32>
    %344 = arith.mulf %335, %317 : vector<2x64xf32>
    %345 = arith.mulf %329, %337 : vector<2x64xf32>
    %346 = arith.addf %344, %345 : vector<2x64xf32>
    %347 = math.tanh %346 : vector<2x64xf32>
    %348 = arith.mulf %343, %347 : vector<2x64xf32>
    %c4_91 = arith.constant 4 : index
    %c0_92 = arith.constant 0 : index
    %349 = vector.load %arg9[%c4_91, %c0_92] : memref<16x64xf32, #tpu.memory_space<vmem>>, vector<2x64xf32>
    tpu.vector_store %arg9[%c4_91, %c0_92], %348 {strides = array<i32>} : memref<16x64xf32, #tpu.memory_space<vmem>>, vector<2x64xf32>,
    %350 = vector.extract_strided_slice %260 {offsets = [6, 0], sizes = [2, 256], strides = [1, 1]} : vector<16x256xf32> to vector<2x256xf32>
    %cst_93 = arith.constant dense<0.000000e+00> : vector<2x256xf32>
    %351 = tpu.matmul %348, %254, %cst_93 {dimension_numbers = #tpu.dot_dimension_numbers<[1], [0], [0], [1], [0, 0, 1, 1], [], []>} : vector<2x64xf32>, vector<64x256xf32>, vector<2x256xf32> -> vector<2x256xf32>
    %352 = arith.addf %350, %351 : vector<2x256xf32>
    %353 = vector.extract_strided_slice %352 {offsets = [0, 0], sizes = [2, 64], strides = [1, 1]} : vector<2x256xf32> to vector<2x64xf32>
    %354 = arith.negf %353 : vector<2x64xf32>
    %355 = math.exp %354 : vector<2x64xf32>
    %cst_94 = arith.constant 1.000000e+00 : f32
    %356 = vector.broadcast %cst_94 : f32 to vector<2x64xf32>
    %357 = arith.addf %356, %355 : vector<2x64xf32>
    %358 = arith.divf %356, %357 : vector<2x64xf32>
    %359 = vector.extract_strided_slice %352 {offsets = [0, 64], sizes = [2, 64], strides = [1, 1]} : vector<2x256xf32> to vector<2x64xf32>
    %360 = arith.negf %359 : vector<2x64xf32>
    %361 = math.exp %360 : vector<2x64xf32>
    %cst_95 = arith.constant 1.000000e+00 : f32
    %362 = vector.broadcast %cst_95 : f32 to vector<2x64xf32>
    %363 = arith.addf %362, %361 : vector<2x64xf32>
    %364 = arith.divf %362, %363 : vector<2x64xf32>
    %365 = vector.extract_strided_slice %352 {offsets = [0, 128], sizes = [2, 64], strides = [1, 1]} : vector<2x256xf32> to vector<2x64xf32>
    %366 = math.tanh %365 : vector<2x64xf32>
    %367 = vector.extract_strided_slice %352 {offsets = [0, 192], sizes = [2, 64], strides = [1, 1]} : vector<2x256xf32> to vector<2x64xf32>
    %368 = arith.negf %367 : vector<2x64xf32>
    %369 = math.exp %368 : vector<2x64xf32>
    %cst_96 = arith.constant 1.000000e+00 : f32
    %370 = vector.broadcast %cst_96 : f32 to vector<2x64xf32>
    %371 = arith.addf %370, %369 : vector<2x64xf32>
    %372 = arith.divf %370, %371 : vector<2x64xf32>
    %373 = arith.mulf %364, %346 : vector<2x64xf32>
    %374 = arith.mulf %358, %366 : vector<2x64xf32>
    %375 = arith.addf %373, %374 : vector<2x64xf32>
    %376 = math.tanh %375 : vector<2x64xf32>
    %377 = arith.mulf %372, %376 : vector<2x64xf32>
    %c6_97 = arith.constant 6 : index
    %c0_98 = arith.constant 0 : index
    %378 = vector.load %arg9[%c6_97, %c0_98] : memref<16x64xf32, #tpu.memory_space<vmem>>, vector<2x64xf32>
    tpu.vector_store %arg9[%c6_97, %c0_98], %377 {strides = array<i32>} : memref<16x64xf32, #tpu.memory_space<vmem>>, vector<2x64xf32>,
    %379 = vector.extract_strided_slice %260 {offsets = [8, 0], sizes = [2, 256], strides = [1, 1]} : vector<16x256xf32> to vector<2x256xf32>
    %cst_99 = arith.constant dense<0.000000e+00> : vector<2x256xf32>
    %380 = tpu.matmul %377, %254, %cst_99 {dimension_numbers = #tpu.dot_dimension_numbers<[1], [0], [0], [1], [0, 0, 1, 1], [], []>} : vector<2x64xf32>, vector<64x256xf32>, vector<2x256xf32> -> vector<2x256xf32>
    %381 = arith.addf %379, %380 : vector<2x256xf32>
    %382 = vector.extract_strided_slice %381 {offsets = [0, 0], sizes = [2, 64], strides = [1, 1]} : vector<2x256xf32> to vector<2x64xf32>
    %383 = arith.negf %382 : vector<2x64xf32>
    %384 = math.exp %383 : vector<2x64xf32>
    %cst_100 = arith.constant 1.000000e+00 : f32
    %385 = vector.broadcast %cst_100 : f32 to vector<2x64xf32>
    %386 = arith.addf %385, %384 : vector<2x64xf32>
    %387 = arith.divf %385, %386 : vector<2x64xf32>
    %388 = vector.extract_strided_slice %381 {offsets = [0, 64], sizes = [2, 64], strides = [1, 1]} : vector<2x256xf32> to vector<2x64xf32>
    %389 = arith.negf %388 : vector<2x64xf32>
    %390 = math.exp %389 : vector<2x64xf32>
    %cst_101 = arith.constant 1.000000e+00 : f32
    %391 = vector.broadcast %cst_101 : f32 to vector<2x64xf32>
    %392 = arith.addf %391, %390 : vector<2x64xf32>
    %393 = arith.divf %391, %392 : vector<2x64xf32>
    %394 = vector.extract_strided_slice %381 {offsets = [0, 128], sizes = [2, 64], strides = [1, 1]} : vector<2x256xf32> to vector<2x64xf32>
    %395 = math.tanh %394 : vector<2x64xf32>
    %396 = vector.extract_strided_slice %381 {offsets = [0, 192], sizes = [2, 64], strides = [1, 1]} : vector<2x256xf32> to vector<2x64xf32>
    %397 = arith.negf %396 : vector<2x64xf32>
    %398 = math.exp %397 : vector<2x64xf32>
    %cst_102 = arith.constant 1.000000e+00 : f32
    %399 = vector.broadcast %cst_102 : f32 to vector<2x64xf32>
    %400 = arith.addf %399, %398 : vector<2x64xf32>
    %401 = arith.divf %399, %400 : vector<2x64xf32>
    %402 = arith.mulf %393, %375 : vector<2x64xf32>
    %403 = arith.mulf %387, %395 : vector<2x64xf32>
    %404 = arith.addf %402, %403 : vector<2x64xf32>
    %405 = math.tanh %404 : vector<2x64xf32>
    %406 = arith.mulf %401, %405 : vector<2x64xf32>
    %c8_103 = arith.constant 8 : index
    %c0_104 = arith.constant 0 : index
    %407 = vector.load %arg9[%c8_103, %c0_104] : memref<16x64xf32, #tpu.memory_space<vmem>>, vector<2x64xf32>
    tpu.vector_store %arg9[%c8_103, %c0_104], %406 {strides = array<i32>} : memref<16x64xf32, #tpu.memory_space<vmem>>, vector<2x64xf32>,
    %408 = vector.extract_strided_slice %260 {offsets = [10, 0], sizes = [2, 256], strides = [1, 1]} : vector<16x256xf32> to vector<2x256xf32>
    %cst_105 = arith.constant dense<0.000000e+00> : vector<2x256xf32>
    %409 = tpu.matmul %406, %254, %cst_105 {dimension_numbers = #tpu.dot_dimension_numbers<[1], [0], [0], [1], [0, 0, 1, 1], [], []>} : vector<2x64xf32>, vector<64x256xf32>, vector<2x256xf32> -> vector<2x256xf32>
    %410 = arith.addf %408, %409 : vector<2x256xf32>
    %411 = vector.extract_strided_slice %410 {offsets = [0, 0], sizes = [2, 64], strides = [1, 1]} : vector<2x256xf32> to vector<2x64xf32>
    %412 = arith.negf %411 : vector<2x64xf32>
    %413 = math.exp %412 : vector<2x64xf32>
    %cst_106 = arith.constant 1.000000e+00 : f32
    %414 = vector.broadcast %cst_106 : f32 to vector<2x64xf32>
    %415 = arith.addf %414, %413 : vector<2x64xf32>
    %416 = arith.divf %414, %415 : vector<2x64xf32>
    %417 = vector.extract_strided_slice %410 {offsets = [0, 64], sizes = [2, 64], strides = [1, 1]} : vector<2x256xf32> to vector<2x64xf32>
    %418 = arith.negf %417 : vector<2x64xf32>
    %419 = math.exp %418 : vector<2x64xf32>
    %cst_107 = arith.constant 1.000000e+00 : f32
    %420 = vector.broadcast %cst_107 : f32 to vector<2x64xf32>
    %421 = arith.addf %420, %419 : vector<2x64xf32>
    %422 = arith.divf %420, %421 : vector<2x64xf32>
    %423 = vector.extract_strided_slice %410 {offsets = [0, 128], sizes = [2, 64], strides = [1, 1]} : vector<2x256xf32> to vector<2x64xf32>
    %424 = math.tanh %423 : vector<2x64xf32>
    %425 = vector.extract_strided_slice %410 {offsets = [0, 192], sizes = [2, 64], strides = [1, 1]} : vector<2x256xf32> to vector<2x64xf32>
    %426 = arith.negf %425 : vector<2x64xf32>
    %427 = math.exp %426 : vector<2x64xf32>
    %cst_108 = arith.constant 1.000000e+00 : f32
    %428 = vector.broadcast %cst_108 : f32 to vector<2x64xf32>
    %429 = arith.addf %428, %427 : vector<2x64xf32>
    %430 = arith.divf %428, %429 : vector<2x64xf32>
    %431 = arith.mulf %422, %404 : vector<2x64xf32>
    %432 = arith.mulf %416, %424 : vector<2x64xf32>
    %433 = arith.addf %431, %432 : vector<2x64xf32>
    %434 = math.tanh %433 : vector<2x64xf32>
    %435 = arith.mulf %430, %434 : vector<2x64xf32>
    %c10_109 = arith.constant 10 : index
    %c0_110 = arith.constant 0 : index
    %436 = vector.load %arg9[%c10_109, %c0_110] : memref<16x64xf32, #tpu.memory_space<vmem>>, vector<2x64xf32>
    tpu.vector_store %arg9[%c10_109, %c0_110], %435 {strides = array<i32>} : memref<16x64xf32, #tpu.memory_space<vmem>>, vector<2x64xf32>,
    %437 = vector.extract_strided_slice %260 {offsets = [12, 0], sizes = [2, 256], strides = [1, 1]} : vector<16x256xf32> to vector<2x256xf32>
    %cst_111 = arith.constant dense<0.000000e+00> : vector<2x256xf32>
    %438 = tpu.matmul %435, %254, %cst_111 {dimension_numbers = #tpu.dot_dimension_numbers<[1], [0], [0], [1], [0, 0, 1, 1], [], []>} : vector<2x64xf32>, vector<64x256xf32>, vector<2x256xf32> -> vector<2x256xf32>
    %439 = arith.addf %437, %438 : vector<2x256xf32>
    %440 = vector.extract_strided_slice %439 {offsets = [0, 0], sizes = [2, 64], strides = [1, 1]} : vector<2x256xf32> to vector<2x64xf32>
    %441 = arith.negf %440 : vector<2x64xf32>
    %442 = math.exp %441 : vector<2x64xf32>
    %cst_112 = arith.constant 1.000000e+00 : f32
    %443 = vector.broadcast %cst_112 : f32 to vector<2x64xf32>
    %444 = arith.addf %443, %442 : vector<2x64xf32>
    %445 = arith.divf %443, %444 : vector<2x64xf32>
    %446 = vector.extract_strided_slice %439 {offsets = [0, 64], sizes = [2, 64], strides = [1, 1]} : vector<2x256xf32> to vector<2x64xf32>
    %447 = arith.negf %446 : vector<2x64xf32>
    %448 = math.exp %447 : vector<2x64xf32>
    %cst_113 = arith.constant 1.000000e+00 : f32
    %449 = vector.broadcast %cst_113 : f32 to vector<2x64xf32>
    %450 = arith.addf %449, %448 : vector<2x64xf32>
    %451 = arith.divf %449, %450 : vector<2x64xf32>
    %452 = vector.extract_strided_slice %439 {offsets = [0, 128], sizes = [2, 64], strides = [1, 1]} : vector<2x256xf32> to vector<2x64xf32>
    %453 = math.tanh %452 : vector<2x64xf32>
    %454 = vector.extract_strided_slice %439 {offsets = [0, 192], sizes = [2, 64], strides = [1, 1]} : vector<2x256xf32> to vector<2x64xf32>
    %455 = arith.negf %454 : vector<2x64xf32>
    %456 = math.exp %455 : vector<2x64xf32>
    %cst_114 = arith.constant 1.000000e+00 : f32
    %457 = vector.broadcast %cst_114 : f32 to vector<2x64xf32>
    %458 = arith.addf %457, %456 : vector<2x64xf32>
    %459 = arith.divf %457, %458 : vector<2x64xf32>
    %460 = arith.mulf %451, %433 : vector<2x64xf32>
    %461 = arith.mulf %445, %453 : vector<2x64xf32>
    %462 = arith.addf %460, %461 : vector<2x64xf32>
    %463 = math.tanh %462 : vector<2x64xf32>
    %464 = arith.mulf %459, %463 : vector<2x64xf32>
    %c12_115 = arith.constant 12 : index
    %c0_116 = arith.constant 0 : index
    %465 = vector.load %arg9[%c12_115, %c0_116] : memref<16x64xf32, #tpu.memory_space<vmem>>, vector<2x64xf32>
    tpu.vector_store %arg9[%c12_115, %c0_116], %464 {strides = array<i32>} : memref<16x64xf32, #tpu.memory_space<vmem>>, vector<2x64xf32>,
    %466 = vector.extract_strided_slice %260 {offsets = [14, 0], sizes = [2, 256], strides = [1, 1]} : vector<16x256xf32> to vector<2x256xf32>
    %cst_117 = arith.constant dense<0.000000e+00> : vector<2x256xf32>
    %467 = tpu.matmul %464, %254, %cst_117 {dimension_numbers = #tpu.dot_dimension_numbers<[1], [0], [0], [1], [0, 0, 1, 1], [], []>} : vector<2x64xf32>, vector<64x256xf32>, vector<2x256xf32> -> vector<2x256xf32>
    %468 = arith.addf %466, %467 : vector<2x256xf32>
    %469 = vector.extract_strided_slice %468 {offsets = [0, 0], sizes = [2, 64], strides = [1, 1]} : vector<2x256xf32> to vector<2x64xf32>
    %470 = arith.negf %469 : vector<2x64xf32>
    %471 = math.exp %470 : vector<2x64xf32>
    %cst_118 = arith.constant 1.000000e+00 : f32
    %472 = vector.broadcast %cst_118 : f32 to vector<2x64xf32>
    %473 = arith.addf %472, %471 : vector<2x64xf32>
    %474 = arith.divf %472, %473 : vector<2x64xf32>
    %475 = vector.extract_strided_slice %468 {offsets = [0, 64], sizes = [2, 64], strides = [1, 1]} : vector<2x256xf32> to vector<2x64xf32>
    %476 = arith.negf %475 : vector<2x64xf32>
    %477 = math.exp %476 : vector<2x64xf32>
    %cst_119 = arith.constant 1.000000e+00 : f32
    %478 = vector.broadcast %cst_119 : f32 to vector<2x64xf32>
    %479 = arith.addf %478, %477 : vector<2x64xf32>
    %480 = arith.divf %478, %479 : vector<2x64xf32>
    %481 = vector.extract_strided_slice %468 {offsets = [0, 128], sizes = [2, 64], strides = [1, 1]} : vector<2x256xf32> to vector<2x64xf32>
    %482 = math.tanh %481 : vector<2x64xf32>
    %483 = vector.extract_strided_slice %468 {offsets = [0, 192], sizes = [2, 64], strides = [1, 1]} : vector<2x256xf32> to vector<2x64xf32>
    %484 = arith.negf %483 : vector<2x64xf32>
    %485 = math.exp %484 : vector<2x64xf32>
    %cst_120 = arith.constant 1.000000e+00 : f32
    %486 = vector.broadcast %cst_120 : f32 to vector<2x64xf32>
    %487 = arith.addf %486, %485 : vector<2x64xf32>
    %488 = arith.divf %486, %487 : vector<2x64xf32>
    %489 = arith.mulf %480, %462 : vector<2x64xf32>
    %490 = arith.mulf %474, %482 : vector<2x64xf32>
    %491 = arith.addf %489, %490 : vector<2x64xf32>
    %492 = math.tanh %491 : vector<2x64xf32>
    %493 = arith.mulf %488, %492 : vector<2x64xf32>
    %c14_121 = arith.constant 14 : index
    %c0_122 = arith.constant 0 : index
    %494 = vector.load %arg9[%c14_121, %c0_122] : memref<16x64xf32, #tpu.memory_space<vmem>>, vector<2x64xf32>
    tpu.vector_store %arg9[%c14_121, %c0_122], %493 {strides = array<i32>} : memref<16x64xf32, #tpu.memory_space<vmem>>, vector<2x64xf32>,
    %c0_123 = arith.constant 0 : index
    %c0_124 = arith.constant 0 : index
    %495 = vector.load %arg9[%c0_123, %c0_124] : memref<16x64xf32, #tpu.memory_space<vmem>>, vector<16x64xf32>
    %c0_125 = arith.constant 0 : index
    %c0_126 = arith.constant 0 : index
    %496 = vector.load %arg6[%c0_125, %c0_126] : memref<1x64xf32, #tpu.memory_space<vmem>>, vector<1x64xf32>
    %cst_127 = arith.constant dense<0.000000e+00> : vector<1x16xf32>
    %497 = tpu.matmul %496, %495, %cst_127 {dimension_numbers = #tpu.dot_dimension_numbers<[1], [1], [0], [0], [0, 0, 1, 0], [], []>} : vector<1x64xf32>, vector<16x64xf32>, vector<1x16xf32> -> vector<1x16xf32>
    %c0_128 = arith.constant 0 : index
    %c0_129 = arith.constant 0 : index
    %498 = vector.load %arg7[%c0_128, %c0_129] : memref<1x1xf32, #tpu.memory_space<vmem>>, vector<1x1xf32>
    %499 = vector.broadcast %498 : vector<1x1xf32> to vector<1x16xf32>
    %500 = arith.addf %497, %499 : vector<1x16xf32>
    %501 = arith.negf %500 : vector<1x16xf32>
    %502 = math.exp %501 : vector<1x16xf32>
    %cst_130 = arith.constant 1.000000e+00 : f32
    %503 = vector.broadcast %cst_130 : f32 to vector<1x16xf32>
    %504 = arith.addf %503, %502 : vector<1x16xf32>
    %505 = arith.divf %503, %504 : vector<1x16xf32>
    %c0_131 = arith.constant 0 : index
    %c0_132 = arith.constant 0 : index
    %506 = vector.load %arg8[%c0_131, %c0_132] : memref<1x16xf32, #tpu.memory_space<vmem>>, vector<1x16xf32>
    tpu.vector_store %arg8[%c0_131, %c0_132], %505 {strides = array<i32>} : memref<1x16xf32, #tpu.memory_space<vmem>>, vector<1x16xf32>,
    return
  }
}

</mosaic_0001>

<llo_original>
// kernel: lstm_forward.1
$region0: #{lstm_forward.1}
  #allocation0 [shape = 'u32[]', space=smem, size = 0x4, offset = 0x4, fixed_abs, tag = 'smem constant byte address 0x4 - core index']
  #allocation1 [shape = 'u32[144,128]{1,0:T(1,128)}', space=vmem, size = 0x12000, scoped, tag = 'internal scratch']
  #allocation2 [shape = 'f32[16,64]{1,0:T(8,128)}', space=vmem, size = 0x2000, scoped, tag = 'scratch operand']
  #allocation3 [shape = 'f32[1,1]{1,0:T(1,128)S(1)}', space=vmem, size = 0x200, scoped, tag = 'scoped memory for lstm_forward.1']
  %s0 = inlined_call_operand.vmem [shape: f32[16,84], index: 0, kind: input, shape index: {}]
  %s1 = inlined_call_operand.vmem [shape: f32[84,64], index: 1, kind: input, shape index: {}]
  %s2 = inlined_call_operand.vmem [shape: f32[1,64], index: 2, kind: input, shape index: {}]
  %s3 = inlined_call_operand.vmem [shape: f32[2,64,256], index: 3, kind: input, shape index: {}]
  %s4 = inlined_call_operand.vmem [shape: f32[2,64,256], index: 4, kind: input, shape index: {}]
  %s5 = inlined_call_operand.vmem [shape: f32[2,1,256], index: 5, kind: input, shape index: {}]
  %s6 = inlined_call_operand.vmem [shape: f32[1,64], index: 6, kind: input, shape index: {}]
  %s7 = inlined_call_operand.<no memory space> [shape: f32[1,1], index: 7, kind: input, shape index: {}]
  %s8 = inlined_call_operand.vmem [shape: f32[1,16], index: 8, kind: output, shape index: {}]
  %s9 = sld [smem:[#allocation0]]
  $region42: #{lstm_forward.1} parent=0
    _
  %s11 = ssub.s32 1, %s9
  %s12 = scalar_select 0, %s11, %s9
  %v13 = vstv %s7
  %14 = vst [vmem:[#allocation3] sm:$0x1] %v13
  // Predicated region
  $region2: #{lstm_forward.1} parent=0 // pred_check
    _
  $region3: #{lstm_forward.1} parent=0 // pred_check_branch
    %16 = sbr.rel (0) target = $region5
  $region4: #{lstm_forward.1} parent=0 // pred_region
    _
  $region5: #{lstm_forward.1} parent=0 // pred_fallthru
    _
  // Predicated region
  $region6: #{lstm_forward.1} parent=0 // pred_check
    _
  $region7: #{lstm_forward.1} parent=0 // pred_check_branch
    %18 = sbr.rel (0) target = $region9
  $region8: #{lstm_forward.1} parent=0 // pred_region
    _
  $region9: #{lstm_forward.1} parent=0 // pred_fallthru
    _
  // Predicated region
  $region10: #{lstm_forward.1} parent=0 // pred_check
    _
  $region11: #{lstm_forward.1} parent=0 // pred_check_branch
    %20 = sbr.rel (0) target = $region13
  $region12: #{lstm_forward.1} parent=0 // pred_region
    _
  $region13: #{lstm_forward.1} parent=0 // pred_fallthru
    _
  // Predicated region
  $region14: #{lstm_forward.1} parent=0 // pred_check
    _
  $region15: #{lstm_forward.1} parent=0 // pred_check_branch
    %22 = sbr.rel (0) target = $region17
  $region16: #{lstm_forward.1} parent=0 // pred_region
    _
  $region17: #{lstm_forward.1} parent=0 // pred_fallthru
    _
  // Predicated region
  $region18: #{lstm_forward.1} parent=0 // pred_check
    _
  $region19: #{lstm_forward.1} parent=0 // pred_check_branch
    %24 = sbr.rel (0) target = $region21
  $region20: #{lstm_forward.1} parent=0 // pred_region
    _
  $region21: #{lstm_forward.1} parent=0 // pred_fallthru
    _
  // Predicated region
  $region22: #{lstm_forward.1} parent=0 // pred_check
    _
  $region23: #{lstm_forward.1} parent=0 // pred_check_branch
    %26 = sbr.rel (0) target = $region25
  $region24: #{lstm_forward.1} parent=0 // pred_region
    _
  $region25: #{lstm_forward.1} parent=0 // pred_fallthru
    _
  // Predicated region
  $region26: #{lstm_forward.1} parent=0 // pred_check
    _
  $region27: #{lstm_forward.1} parent=0 // pred_check_branch
    %28 = sbr.rel (0) target = $region29
  $region28: #{lstm_forward.1} parent=0 // pred_region
    _
  $region29: #{lstm_forward.1} parent=0 // pred_fallthru
    _
  // Predicated region
  $region30: #{lstm_forward.1} parent=0 // pred_check
    _
  $region31: #{lstm_forward.1} parent=0 // pred_check_branch
    %30 = sbr.rel (0) target = $region33
  $region32: #{lstm_forward.1} parent=0 // pred_region
    _
  $region33: #{lstm_forward.1} parent=0 // pred_fallthru
    _
  %v31 = vld [vmem:[%s0] sm:$0xff]
  %v32 = vld [vmem:[%s0 + $0x8] sm:$0xff]
  %v33 = vld [vmem:[%s1] sm:$0xff]
  %v34 = vld [vmem:[%s1 + $0x8] sm:$0xff]
  %v35 = vld [vmem:[%s1 + $0x10] sm:$0xff]
  %v36 = vld [vmem:[%s1 + $0x18] sm:$0xff]
  %v37 = vld [vmem:[%s1 + $0x20] sm:$0xff]
  %v38 = vld [vmem:[%s1 + $0x28] sm:$0xff]
  %v39 = vld [vmem:[%s1 + $0x30] sm:$0xff]
  %v40 = vld [vmem:[%s1 + $0x38] sm:$0xff]
  %v41 = vld [vmem:[%s1 + $0x40] sm:$0xff]
  %v42 = vld [vmem:[%s1 + $0x48] sm:$0xff]
  %v43 = vld [vmem:[%s1 + $0x50] sm:$0xf]
  %v44 = vld [vmem:[%s2] sm:$0x1]
  %v46 = vlaneseq
  %v47 = vshrl.u32 %v46, 7
  %v48 = vsub.s32 0, %v47
  %v49 = vrot.slane %v44, %v48
  %vm51 = vcmask 687104
  %v53 = vsel %vm51, %v31, 0
  %v56 = vsel %vm51, %v32, 0
  %vm58 = vcmask 1043456
  %v60 = vsel %vm58, %v43, 0
  %62 = vmatprep.subr.mxu0 0.0
  %63 = vmatpush1.msra.mxu0 0.0
  %64 = vmatprep.subr.mxu0 0.0
  %65 = vmatpush1.msra.mxu0 0.0
  %66 = vmatprep.subr.mxu0 0.0
  %67 = vmatpush1.msra.mxu0 0.0
  %68 = vmatprep.subr.mxu0 0.0
  %69 = vmatpush1.msra.mxu0 0.0
  %70 = vmatprep.subr.mxu0 0.0
  %71 = vmatpush1.msra.mxu0 0.0
  %72 = vmatprep.subr.mxu0 0.0
  %73 = vmatpush1.msra.mxu0 %v60
  %74 = vmatprep.subr.mxu0 0.0
  %75 = vmatpush1.msra.mxu0 %v42
  %76 = vmatprep.subr.mxu0 0.0
  %77 = vmatpush1.msra.mxu0 %v41
  %78 = vmatprep.subr.mxu0 0.0
  %79 = vmatpush1.msra.mxu0 %v40
  %80 = vmatprep.subr.mxu0 0.0
  %81 = vmatpush1.msra.mxu0 %v39
  %82 = vmatprep.subr.mxu0 0.0
  %83 = vmatpush1.msra.mxu0 %v38
  %84 = vmatprep.subr.mxu0 0.0
  %85 = vmatpush1.msra.mxu0 %v37
  %86 = vmatprep.subr.mxu0 0.0
  %87 = vmatpush1.msra.mxu0 %v36
  %88 = vmatprep.subr.mxu0 0.0
  %89 = vmatpush1.msra.mxu0 %v35
  %90 = vmatprep.subr.mxu0 0.0
  %91 = vmatpush1.msra.mxu0 %v34
  %92 = vmatprep.subr.mxu0 0.0
  %93 = vmatpush1.msra.mxu0 %v33
  %94 = vmatprep.subr.mxu0 0.0
  %95 = vmatpush2.msra.mxu0 0.0
  %96 = vmatprep.subr.mxu0 0.0
  %97 = vmatpush2.msra.mxu0 0.0
  %98 = vmatprep.subr.mxu0 0.0
  %99 = vmatpush2.msra.mxu0 0.0
  %100 = vmatprep.subr.mxu0 0.0
  %101 = vmatpush2.msra.mxu0 0.0
  %102 = vmatprep.subr.mxu0 0.0
  %103 = vmatpush2.msra.mxu0 0.0
  %104 = vmatprep.subr.mxu0 0.0
  %105 = vmatpush2.msra.mxu0 0.0
  %106 = vmatprep.subr.mxu0 0.0
  %107 = vmatpush2.msra.mxu0 0.0
  %108 = vmatprep.subr.mxu0 0.0
  %109 = vmatpush2.msra.mxu0 0.0
  %110 = vmatprep.subr.mxu0 0.0
  %111 = vmatpush2.msra.mxu0 0.0
  %112 = vmatprep.subr.mxu0 0.0
  %113 = vmatpush2.msra.mxu0 0.0
  %114 = vmatprep.subr.mxu0 0.0
  %115 = vmatpush2.msra.mxu0 0.0
  %116 = vmatprep.subr.mxu0 0.0
  %117 = vmatpush2.msra.mxu0 0.0
  %118 = vmatprep.subr.mxu0 0.0
  %119 = vmatpush2.msra.mxu0 0.0
  %120 = vmatprep.subr.mxu0 0.0
  %121 = vmatpush2.msra.mxu0 0.0
  %122 = vmatprep.subr.mxu0 0.0
  %123 = vmatpush2.msra.mxu0 0.0
  %124 = vmatprep.subr.mxu0 0.0
  %125 = vmatpush2.msra.mxu0 0.0
  %126 = vmatprep.mubr.f32.mxu0 0.0
  %127 = vmatmul.mubr.f32.gmra.mxu0 %v53
  %v128 = vpop.f32.mrf.mxu0
  %v129 = vadd.f32 %v49, %v128
  %v130 = vpop.f32.mrf.mxu0
  %131 = vmatprep.mubr.f32.mxu0 0.0
  %132 = vmatmul.mubr.f32.gmra.mxu0 %v56
  %v133 = vpop.f32.mrf.mxu0
  %v134 = vadd.f32 %v49, %v133
  %v135 = vpop.f32.mrf.mxu0
  %136 = vdwg.mxu0
  %vm137 = vcmask 523264
  %138 = vst.msk [vmem:[#allocation2] sm:$0xff] %vm137, %v129
  %139 = vst.msk [vmem:[#allocation2 + $0x8] sm:$0xff] %vm137, %v134
  %v140 = vld [vmem:[%s3] sm:$0xff]
  %v141 = vld [vmem:[%s3 + $0x8] sm:$0xff]
  %v142 = vld [vmem:[%s3 + $0x10] sm:$0xff]
  %v143 = vld [vmem:[%s3 + $0x18] sm:$0xff]
  %v144 = vld [vmem:[%s3 + $0x20] sm:$0xff]
  %v145 = vld [vmem:[%s3 + $0x28] sm:$0xff]
  %v146 = vld [vmem:[%s3 + $0x30] sm:$0xff]
  %v147 = vld [vmem:[%s3 + $0x38] sm:$0xff]
  %v148 = vld [vmem:[%s3 + $0x40] sm:$0xff]
  %v149 = vld [vmem:[%s3 + $0x48] sm:$0xff]
  %v150 = vld [vmem:[%s3 + $0x50] sm:$0xff]
  %v151 = vld [vmem:[%s3 + $0x58] sm:$0xff]
  %v152 = vld [vmem:[%s3 + $0x60] sm:$0xff]
  %v153 = vld [vmem:[%s3 + $0x68] sm:$0xff]
  %v154 = vld [vmem:[%s3 + $0x70] sm:$0xff]
  %v155 = vld [vmem:[%s3 + $0x78] sm:$0xff]
  %v156 = vld [vmem:[%s4] sm:$0xff]
  %v157 = vld [vmem:[%s4 + $0x8] sm:$0xff]
  %v158 = vld [vmem:[%s4 + $0x10] sm:$0xff]
  %v159 = vld [vmem:[%s4 + $0x18] sm:$0xff]
  %v160 = vld [vmem:[%s4 + $0x20] sm:$0xff]
  %v161 = vld [vmem:[%s4 + $0x28] sm:$0xff]
  %v162 = vld [vmem:[%s4 + $0x30] sm:$0xff]
  %v163 = vld [vmem:[%s4 + $0x38] sm:$0xff]
  %v164 = vld [vmem:[%s4 + $0x40] sm:$0xff]
  %v165 = vld [vmem:[%s4 + $0x48] sm:$0xff]
  %v166 = vld [vmem:[%s4 + $0x50] sm:$0xff]
  %v167 = vld [vmem:[%s4 + $0x58] sm:$0xff]
  %v168 = vld [vmem:[%s4 + $0x60] sm:$0xff]
  %v169 = vld [vmem:[%s4 + $0x68] sm:$0xff]
  %v170 = vld [vmem:[%s4 + $0x70] sm:$0xff]
  %v171 = vld [vmem:[%s4 + $0x78] sm:$0xff]
  %v172 = vld [vmem:[%s5] sm:$0x3]
  %v173 = vld [vmem:[#allocation2] sm:$0xff]
  %v174 = vld [vmem:[#allocation2 + $0x8] sm:$0xff]
  %v176 = vlaneseq
  %v177 = vshrl.u32 %v176, 7
  %v178 = vsub.s32 0, %v177
  %v179 = vrot.slane %v172, %v178
  %v180 = vlaneseq
  %v181 = vshrl.u32 %v180, 7
  %v182 = vsub.s32 1, %v181
  %v183 = vrot.slane %v172, %v182
  %v187 = vsel %vm137, %v173, 0
  %v190 = vsel %vm137, %v174, 0
  %192 = vmatprep.subr.mxu0 0.0
  %193 = vmatpush1.msra.mxu0 0.0
  %194 = vmatprep.subr.mxu0 0.0
  %195 = vmatpush1.msra.mxu0 0.0
  %196 = vmatprep.subr.mxu0 0.0
  %197 = vmatpush1.msra.mxu0 0.0
  %198 = vmatprep.subr.mxu0 0.0
  %199 = vmatpush1.msra.mxu0 0.0
  %200 = vmatprep.subr.mxu0 0.0
  %201 = vmatpush1.msra.mxu0 0.0
  %202 = vmatprep.subr.mxu0 0.0
  %203 = vmatpush1.msra.mxu0 0.0
  %204 = vmatprep.subr.mxu0 0.0
  %205 = vmatpush1.msra.mxu0 0.0
  %206 = vmatprep.subr.mxu0 0.0
  %207 = vmatpush1.msra.mxu0 0.0
  %208 = vmatprep.subr.mxu0 %v155
  %209 = vmatpush1.msra.mxu0 %v154
  %210 = vmatprep.subr.mxu0 %v153
  %211 = vmatpush1.msra.mxu0 %v152
  %212 = vmatprep.subr.mxu0 %v151
  %213 = vmatpush1.msra.mxu0 %v150
  %214 = vmatprep.subr.mxu0 %v149
  %215 = vmatpush1.msra.mxu0 %v148
  %216 = vmatprep.subr.mxu0 %v147
  %217 = vmatpush1.msra.mxu0 %v146
  %218 = vmatprep.subr.mxu0 %v145
  %219 = vmatpush1.msra.mxu0 %v144
  %220 = vmatprep.subr.mxu0 %v143
  %221 = vmatpush1.msra.mxu0 %v142
  %222 = vmatprep.subr.mxu0 %v141
  %223 = vmatpush1.msra.mxu0 %v140
  %224 = vmatprep.subr.mxu0 0.0
  %225 = vmatpush2.msra.mxu0 0.0
  %226 = vmatprep.subr.mxu0 0.0
  %227 = vmatpush2.msra.mxu0 0.0
  %228 = vmatprep.subr.mxu0 0.0
  %229 = vmatpush2.msra.mxu0 0.0
  %230 = vmatprep.subr.mxu0 0.0
  %231 = vmatpush2.msra.mxu0 0.0
  %232 = vmatprep.subr.mxu0 0.0
  %233 = vmatpush2.msra.mxu0 0.0
  %234 = vmatprep.subr.mxu0 0.0
  %235 = vmatpush2.msra.mxu0 0.0
  %236 = vmatprep.subr.mxu0 0.0
  %237 = vmatpush2.msra.mxu0 0.0
  %238 = vmatprep.subr.mxu0 0.0
  %239 = vmatpush2.msra.mxu0 0.0
  %240 = vmatprep.subr.mxu0 0.0
  %241 = vmatpush2.msra.mxu0 0.0
  %242 = vmatprep.subr.mxu0 0.0
  %243 = vmatpush2.msra.mxu0 0.0
  %244 = vmatprep.subr.mxu0 0.0
  %245 = vmatpush2.msra.mxu0 0.0
  %246 = vmatprep.subr.mxu0 0.0
  %247 = vmatpush2.msra.mxu0 0.0
  %248 = vmatprep.subr.mxu0 0.0
  %249 = vmatpush2.msra.mxu0 0.0
  %250 = vmatprep.subr.mxu0 0.0
  %251 = vmatpush2.msra.mxu0 0.0
  %252 = vmatprep.subr.mxu0 0.0
  %253 = vmatpush2.msra.mxu0 0.0
  %254 = vmatprep.subr.mxu0 0.0
  %255 = vmatpush2.msra.mxu0 0.0
  %256 = vmatprep.mubr.f32.mxu0 0.0
  %257 = vmatmul.mubr.f32.gmra.mxu0 %v187
  %v258 = vpop.f32.mrf.mxu0
  %v259 = vadd.f32 %v179, %v258
  %v260 = vpop.f32.mrf.mxu0
  %v261 = vadd.f32 %v183, %v260
  %262 = vmatprep.mubr.f32.mxu0 0.0
  %263 = vmatmul.mubr.f32.gmra.mxu0 %v190
  %v264 = vpop.f32.mrf.mxu0
  %v265 = vadd.f32 %v179, %v264
  %v266 = vpop.f32.mrf.mxu0
  %v267 = vadd.f32 %v183, %v266
  %268 = vdwg.mxu0
  %v270 = vsel %vm137, 0.0, 0
  %272 = vmatprep.subr.mxu0 0.0
  %273 = vmatpush1.msra.mxu0 0.0
  %274 = vmatprep.subr.mxu0 0.0
  %275 = vmatpush1.msra.mxu0 0.0
  %276 = vmatprep.subr.mxu0 0.0
  %277 = vmatpush1.msra.mxu0 0.0
  %278 = vmatprep.subr.mxu0 0.0
  %279 = vmatpush1.msra.mxu0 0.0
  %280 = vmatprep.subr.mxu0 0.0
  %281 = vmatpush1.msra.mxu0 0.0
  %282 = vmatprep.subr.mxu0 0.0
  %283 = vmatpush1.msra.mxu0 0.0
  %284 = vmatprep.subr.mxu0 0.0
  %285 = vmatpush1.msra.mxu0 0.0
  %286 = vmatprep.subr.mxu0 0.0
  %287 = vmatpush1.msra.mxu0 0.0
  %288 = vmatprep.subr.mxu0 %v171
  %289 = vmatpush1.msra.mxu0 %v170
  %290 = vmatprep.subr.mxu0 %v169
  %291 = vmatpush1.msra.mxu0 %v168
  %292 = vmatprep.subr.mxu0 %v167
  %293 = vmatpush1.msra.mxu0 %v166
  %294 = vmatprep.subr.mxu0 %v165
  %295 = vmatpush1.msra.mxu0 %v164
  %296 = vmatprep.subr.mxu0 %v163
  %297 = vmatpush1.msra.mxu0 %v162
  %298 = vmatprep.subr.mxu0 %v161
  %299 = vmatpush1.msra.mxu0 %v160
  %300 = vmatprep.subr.mxu0 %v159
  %301 = vmatpush1.msra.mxu0 %v158
  %302 = vmatprep.subr.mxu0 %v157
  %303 = vmatpush1.msra.mxu0 %v156
  %304 = vmatprep.subr.mxu0 0.0
  %305 = vmatpush2.msra.mxu0 0.0
  %306 = vmatprep.subr.mxu0 0.0
  %307 = vmatpush2.msra.mxu0 0.0
  %308 = vmatprep.subr.mxu0 0.0
  %309 = vmatpush2.msra.mxu0 0.0
  %310 = vmatprep.subr.mxu0 0.0
  %311 = vmatpush2.msra.mxu0 0.0
  %312 = vmatprep.subr.mxu0 0.0
  %313 = vmatpush2.msra.mxu0 0.0
  %314 = vmatprep.subr.mxu0 0.0
  %315 = vmatpush2.msra.mxu0 0.0
  %316 = vmatprep.subr.mxu0 0.0
  %317 = vmatpush2.msra.mxu0 0.0
  %318 = vmatprep.subr.mxu0 0.0
  %319 = vmatpush2.msra.mxu0 0.0
  %320 = vmatprep.subr.mxu0 0.0
  %321 = vmatpush2.msra.mxu0 0.0
  %322 = vmatprep.subr.mxu0 0.0
  %323 = vmatpush2.msra.mxu0 0.0
  %324 = vmatprep.subr.mxu0 0.0
  %325 = vmatpush2.msra.mxu0 0.0
  %326 = vmatprep.subr.mxu0 0.0
  %327 = vmatpush2.msra.mxu0 0.0
  %328 = vmatprep.subr.mxu0 0.0
  %329 = vmatpush2.msra.mxu0 0.0
  %330 = vmatprep.subr.mxu0 0.0
  %331 = vmatpush2.msra.mxu0 0.0
  %332 = vmatprep.subr.mxu0 0.0
  %333 = vmatpush2.msra.mxu0 0.0
  %334 = vmatprep.subr.mxu0 0.0
  %335 = vmatpush2.msra.mxu0 0.0
  %336 = vmatprep.mubr.f32.mxu0 0.0
  %337 = vmatmul.mubr.f32.gmra.mxu0 %v270
  %v338 = vpop.f32.mrf.mxu0
  %v339 = vadd.f32 0.0, %v338
  %v340 = vpop.f32.mrf.mxu0
  %v341 = vadd.f32 0.0, %v340
  %342 = vdwg.mxu0
  %v343 = vadd.f32 %v259, %v339
  %v344 = vadd.f32 %v261, %v341
  %v345 = vxor.u32 %v343, 2147483648
  %v346 = vmul.f32 %v345, 1.442695
  %v347 = vpow.pop %v346
  %v348 = vadd.f32 %v347, 1.0
  %v349 = vrcp.pop %v348
  %v350 = vmul.f32 1.0, %v349
  %v351 = vtanh.pop %v344
  %v352 = vxor.u32 %v344, 2147483648
  %v353 = vmul.f32 %v352, 1.442695
  %v354 = vpow.pop %v353
  %v355 = vadd.f32 %v354, 1.0
  %v356 = vrcp.pop %v355
  %v357 = vmul.f32 1.0, %v356
  %v358 = vmul.f32 %v350, 0.0
  %v359 = vmul.f32 %v350, %v351
  %361 = vrot.lane.b32.xlu0 %v359, 64
  %v362 = vpop.permute.xlu0 %361
  %v364 = vadd.f32 %v358, %v362
  %v365 = vtanh.pop %v364
  %v366 = vmul.f32 %v357, %v365
  %368 = vrot.lane.b32.xlu0 %v366, 64
  %v369 = vpop.permute.xlu0 %368
  %vm371 = vcmask 517120
  %372 = vst.msk [vmem:[#allocation2] sm:$0x3] %vm371, %v369
  %v373 = vsel %vm137, %v369, 0
  %375 = vmatprep.subr.mxu0 0.0
  %376 = vmatpush1.msra.mxu0 0.0
  %377 = vmatprep.subr.mxu0 0.0
  %378 = vmatpush1.msra.mxu0 0.0
  %379 = vmatprep.subr.mxu0 0.0
  %380 = vmatpush1.msra.mxu0 0.0
  %381 = vmatprep.subr.mxu0 0.0
  %382 = vmatpush1.msra.mxu0 0.0
  %383 = vmatprep.subr.mxu0 0.0
  %384 = vmatpush1.msra.mxu0 0.0
  %385 = vmatprep.subr.mxu0 0.0
  %386 = vmatpush1.msra.mxu0 0.0
  %387 = vmatprep.subr.mxu0 0.0
  %388 = vmatpush1.msra.mxu0 0.0
  %389 = vmatprep.subr.mxu0 0.0
  %390 = vmatpush1.msra.mxu0 0.0
  %391 = vmatprep.subr.mxu0 %v171
  %392 = vmatpush1.msra.mxu0 %v170
  %393 = vmatprep.subr.mxu0 %v169
  %394 = vmatpush1.msra.mxu0 %v168
  %395 = vmatprep.subr.mxu0 %v167
  %396 = vmatpush1.msra.mxu0 %v166
  %397 = vmatprep.subr.mxu0 %v165
  %398 = vmatpush1.msra.mxu0 %v164
  %399 = vmatprep.subr.mxu0 %v163
  %400 = vmatpush1.msra.mxu0 %v162
  %401 = vmatprep.subr.mxu0 %v161
  %402 = vmatpush1.msra.mxu0 %v160
  %403 = vmatprep.subr.mxu0 %v159
  %404 = vmatpush1.msra.mxu0 %v158
  %405 = vmatprep.subr.mxu0 %v157
  %406 = vmatpush1.msra.mxu0 %v156
  %407 = vmatprep.subr.mxu0 0.0
  %408 = vmatpush2.msra.mxu0 0.0
  %409 = vmatprep.subr.mxu0 0.0
  %410 = vmatpush2.msra.mxu0 0.0
  %411 = vmatprep.subr.mxu0 0.0
  %412 = vmatpush2.msra.mxu0 0.0
  %413 = vmatprep.subr.mxu0 0.0
  %414 = vmatpush2.msra.mxu0 0.0
  %415 = vmatprep.subr.mxu0 0.0
  %416 = vmatpush2.msra.mxu0 0.0
  %417 = vmatprep.subr.mxu0 0.0
  %418 = vmatpush2.msra.mxu0 0.0
  %419 = vmatprep.subr.mxu0 0.0
  %420 = vmatpush2.msra.mxu0 0.0
  %421 = vmatprep.subr.mxu0 0.0
  %422 = vmatpush2.msra.mxu0 0.0
  %423 = vmatprep.subr.mxu0 0.0
  %424 = vmatpush2.msra.mxu0 0.0
  %425 = vmatprep.subr.mxu0 0.0
  %426 = vmatpush2.msra.mxu0 0.0
  %427 = vmatprep.subr.mxu0 0.0
  %428 = vmatpush2.msra.mxu0 0.0
  %429 = vmatprep.subr.mxu0 0.0
  %430 = vmatpush2.msra.mxu0 0.0
  %431 = vmatprep.subr.mxu0 0.0
  %432 = vmatpush2.msra.mxu0 0.0
  %433 = vmatprep.subr.mxu0 0.0
  %434 = vmatpush2.msra.mxu0 0.0
  %435 = vmatprep.subr.mxu0 0.0
  %436 = vmatpush2.msra.mxu0 0.0
  %437 = vmatprep.subr.mxu0 0.0
  %438 = vmatpush2.msra.mxu0 0.0
  %439 = vmatprep.mubr.f32.mxu0 0.0
  %440 = vmatmul.mubr.f32.gmra.mxu0 %v373
  %v441 = vpop.f32.mrf.mxu0
  %v442 = vadd.f32 0.0, %v441
  %v443 = vpop.f32.mrf.mxu0
  %v444 = vadd.f32 0.0, %v443
  %445 = vdwg.mxu0
  %v448 = vrot.slane %v442, 6
  %v449 = vrot.slane %v444, 6
  %v452 = vadd.f32 %v259, %v448
  %v453 = vadd.f32 %v261, %v449
  %v454 = vxor.u32 %v452, 2147483648
  %v455 = vmul.f32 %v454, 1.442695
  %v456 = vpow.pop %v455
  %v457 = vadd.f32 %v456, 1.0
  %v458 = vrcp.pop %v457
  %v459 = vmul.f32 1.0, %v458
  %v460 = vtanh.pop %v453
  %v461 = vxor.u32 %v453, 2147483648
  %v462 = vmul.f32 %v461, 1.442695
  %v463 = vpow.pop %v462
  %v464 = vadd.f32 %v463, 1.0
  %v465 = vrcp.pop %v464
  %v466 = vmul.f32 1.0, %v465
  %v468 = vrot.slane %v364, 6
  %v470 = vmul.f32 %v459, %v468
  %v471 = vmul.f32 %v459, %v460
  %473 = vrot.lane.b32.xlu0 %v471, 64
  %v474 = vpop.permute.xlu0 %473
  %v476 = vadd.f32 %v470, %v474
  %v477 = vtanh.pop %v476
  %v478 = vmul.f32 %v466, %v477
  %480 = vrot.lane.b32.xlu0 %v478, 64
  %v481 = vpop.permute.xlu0 %480
  %vm483 = vcmask 519170
  %484 = vst.msk [vmem:[#allocation2] sm:$0xc] %vm483, %v481
  %v485 = vrot.slane %v478, 2
  %486 = vrot.lane.b32.xlu0 %v485, 64
  %v487 = vpop.permute.xlu0 %486
  %v488 = vsel %vm137, %v487, 0
  %490 = vmatprep.subr.mxu0 0.0
  %491 = vmatpush1.msra.mxu0 0.0
  %492 = vmatprep.subr.mxu0 0.0
  %493 = vmatpush1.msra.mxu0 0.0
  %494 = vmatprep.subr.mxu0 0.0
  %495 = vmatpush1.msra.mxu0 0.0
  %496 = vmatprep.subr.mxu0 0.0
  %497 = vmatpush1.msra.mxu0 0.0
  %498 = vmatprep.subr.mxu0 0.0
  %499 = vmatpush1.msra.mxu0 0.0
  %500 = vmatprep.subr.mxu0 0.0
  %501 = vmatpush1.msra.mxu0 0.0
  %502 = vmatprep.subr.mxu0 0.0
  %503 = vmatpush1.msra.mxu0 0.0
  %504 = vmatprep.subr.mxu0 0.0
  %505 = vmatpush1.msra.mxu0 0.0
  %506 = vmatprep.subr.mxu0 %v171
  %507 = vmatpush1.msra.mxu0 %v170
  %508 = vmatprep.subr.mxu0 %v169
  %509 = vmatpush1.msra.mxu0 %v168
  %510 = vmatprep.subr.mxu0 %v167
  %511 = vmatpush1.msra.mxu0 %v166
  %512 = vmatprep.subr.mxu0 %v165
  %513 = vmatpush1.msra.mxu0 %v164
  %514 = vmatprep.subr.mxu0 %v163
  %515 = vmatpush1.msra.mxu0 %v162
  %516 = vmatprep.subr.mxu0 %v161
  %517 = vmatpush1.msra.mxu0 %v160
  %518 = vmatprep.subr.mxu0 %v159
  %519 = vmatpush1.msra.mxu0 %v158
  %520 = vmatprep.subr.mxu0 %v157
  %521 = vmatpush1.msra.mxu0 %v156
  %522 = vmatprep.subr.mxu0 0.0
  %523 = vmatpush2.msra.mxu0 0.0
  %524 = vmatprep.subr.mxu0 0.0
  %525 = vmatpush2.msra.mxu0 0.0
  %526 = vmatprep.subr.mxu0 0.0
  %527 = vmatpush2.msra.mxu0 0.0
  %528 = vmatprep.subr.mxu0 0.0
  %529 = vmatpush2.msra.mxu0 0.0
  %530 = vmatprep.subr.mxu0 0.0
  %531 = vmatpush2.msra.mxu0 0.0
  %532 = vmatprep.subr.mxu0 0.0
  %533 = vmatpush2.msra.mxu0 0.0
  %534 = vmatprep.subr.mxu0 0.0
  %535 = vmatpush2.msra.mxu0 0.0
  %536 = vmatprep.subr.mxu0 0.0
  %537 = vmatpush2.msra.mxu0 0.0
  %538 = vmatprep.subr.mxu0 0.0
  %539 = vmatpush2.msra.mxu0 0.0
  %540 = vmatprep.subr.mxu0 0.0
  %541 = vmatpush2.msra.mxu0 0.0
  %542 = vmatprep.subr.mxu0 0.0
  %543 = vmatpush2.msra.mxu0 0.0
  %544 = vmatprep.subr.mxu0 0.0
  %545 = vmatpush2.msra.mxu0 0.0
  %546 = vmatprep.subr.mxu0 0.0
  %547 = vmatpush2.msra.mxu0 0.0
  %548 = vmatprep.subr.mxu0 0.0
  %549 = vmatpush2.msra.mxu0 0.0
  %550 = vmatprep.subr.mxu0 0.0
  %551 = vmatpush2.msra.mxu0 0.0
  %552 = vmatprep.subr.mxu0 0.0
  %553 = vmatpush2.msra.mxu0 0.0
  %554 = vmatprep.mubr.f32.mxu0 0.0
  %555 = vmatmul.mubr.f32.gmra.mxu0 %v488
  %v556 = vpop.f32.mrf.mxu0
  %v557 = vadd.f32 0.0, %v556
  %v558 = vpop.f32.mrf.mxu0
  %v559 = vadd.f32 0.0, %v558
  %560 = vdwg.mxu0
  %v563 = vrot.slane %v557, 4
  %v564 = vrot.slane %v559, 4
  %v567 = vadd.f32 %v259, %v563
  %v568 = vadd.f32 %v261, %v564
  %v569 = vxor.u32 %v567, 2147483648
  %v570 = vmul.f32 %v569, 1.442695
  %v571 = vpow.pop %v570
  %v572 = vadd.f32 %v571, 1.0
  %v573 = vrcp.pop %v572
  %v574 = vmul.f32 1.0, %v573
  %v575 = vtanh.pop %v568
  %v576 = vxor.u32 %v568, 2147483648
  %v577 = vmul.f32 %v576, 1.442695
  %v578 = vpow.pop %v577
  %v579 = vadd.f32 %v578, 1.0
  %v580 = vrcp.pop %v579
  %v581 = vmul.f32 1.0, %v580
  %v583 = vrot.slane %v476, 6
  %v585 = vmul.f32 %v574, %v583
  %v586 = vmul.f32 %v574, %v575
  %588 = vrot.lane.b32.xlu0 %v586, 64
  %v589 = vpop.permute.xlu0 %588
  %v591 = vadd.f32 %v585, %v589
  %v592 = vtanh.pop %v591
  %v593 = vmul.f32 %v581, %v592
  %595 = vrot.lane.b32.xlu0 %v593, 64
  %v596 = vpop.permute.xlu0 %595
  %vm598 = vcmask 521220
  %599 = vst.msk [vmem:[#allocation2] sm:$0x30] %vm598, %v596
  %v600 = vrot.slane %v593, 4
  %601 = vrot.lane.b32.xlu0 %v600, 64
  %v602 = vpop.permute.xlu0 %601
  %v603 = vsel %vm137, %v602, 0
  %605 = vmatprep.subr.mxu0 0.0
  %606 = vmatpush1.msra.mxu0 0.0
  %607 = vmatprep.subr.mxu0 0.0
  %608 = vmatpush1.msra.mxu0 0.0
  %609 = vmatprep.subr.mxu0 0.0
  %610 = vmatpush1.msra.mxu0 0.0
  %611 = vmatprep.subr.mxu0 0.0
  %612 = vmatpush1.msra.mxu0 0.0
  %613 = vmatprep.subr.mxu0 0.0
  %614 = vmatpush1.msra.mxu0 0.0
  %615 = vmatprep.subr.mxu0 0.0
  %616 = vmatpush1.msra.mxu0 0.0
  %617 = vmatprep.subr.mxu0 0.0
  %618 = vmatpush1.msra.mxu0 0.0
  %619 = vmatprep.subr.mxu0 0.0
  %620 = vmatpush1.msra.mxu0 0.0
  %621 = vmatprep.subr.mxu0 %v171
  %622 = vmatpush1.msra.mxu0 %v170
  %623 = vmatprep.subr.mxu0 %v169
  %624 = vmatpush1.msra.mxu0 %v168
  %625 = vmatprep.subr.mxu0 %v167
  %626 = vmatpush1.msra.mxu0 %v166
  %627 = vmatprep.subr.mxu0 %v165
  %628 = vmatpush1.msra.mxu0 %v164
  %629 = vmatprep.subr.mxu0 %v163
  %630 = vmatpush1.msra.mxu0 %v162
  %631 = vmatprep.subr.mxu0 %v161
  %632 = vmatpush1.msra.mxu0 %v160
  %633 = vmatprep.subr.mxu0 %v159
  %634 = vmatpush1.msra.mxu0 %v158
  %635 = vmatprep.subr.mxu0 %v157
  %636 = vmatpush1.msra.mxu0 %v156
  %637 = vmatprep.subr.mxu0 0.0
  %638 = vmatpush2.msra.mxu0 0.0
  %639 = vmatprep.subr.mxu0 0.0
  %640 = vmatpush2.msra.mxu0 0.0
  %641 = vmatprep.subr.mxu0 0.0
  %642 = vmatpush2.msra.mxu0 0.0
  %643 = vmatprep.subr.mxu0 0.0
  %644 = vmatpush2.msra.mxu0 0.0
  %645 = vmatprep.subr.mxu0 0.0
  %646 = vmatpush2.msra.mxu0 0.0
  %647 = vmatprep.subr.mxu0 0.0
  %648 = vmatpush2.msra.mxu0 0.0
  %649 = vmatprep.subr.mxu0 0.0
  %650 = vmatpush2.msra.mxu0 0.0
  %651 = vmatprep.subr.mxu0 0.0
  %652 = vmatpush2.msra.mxu0 0.0
  %653 = vmatprep.subr.mxu0 0.0
  %654 = vmatpush2.msra.mxu0 0.0
  %655 = vmatprep.subr.mxu0 0.0
  %656 = vmatpush2.msra.mxu0 0.0
  %657 = vmatprep.subr.mxu0 0.0
  %658 = vmatpush2.msra.mxu0 0.0
  %659 = vmatprep.subr.mxu0 0.0
  %660 = vmatpush2.msra.mxu0 0.0
  %661 = vmatprep.subr.mxu0 0.0
  %662 = vmatpush2.msra.mxu0 0.0
  %663 = vmatprep.subr.mxu0 0.0
  %664 = vmatpush2.msra.mxu0 0.0
  %665 = vmatprep.subr.mxu0 0.0
  %666 = vmatpush2.msra.mxu0 0.0
  %667 = vmatprep.subr.mxu0 0.0
  %668 = vmatpush2.msra.mxu0 0.0
  %669 = vmatprep.mubr.f32.mxu0 0.0
  %670 = vmatmul.mubr.f32.gmra.mxu0 %v603
  %v671 = vpop.f32.mrf.mxu0
  %v672 = vadd.f32 0.0, %v671
  %v673 = vpop.f32.mrf.mxu0
  %v674 = vadd.f32 0.0, %v673
  %675 = vdwg.mxu0
  %v678 = vrot.slane %v672, 2
  %v679 = vrot.slane %v674, 2
  %v682 = vadd.f32 %v259, %v678
  %v683 = vadd.f32 %v261, %v679
  %v684 = vxor.u32 %v682, 2147483648
  %v685 = vmul.f32 %v684, 1.442695
  %v686 = vpow.pop %v685
  %v687 = vadd.f32 %v686, 1.0
  %v688 = vrcp.pop %v687
  %v689 = vmul.f32 1.0, %v688
  %v690 = vtanh.pop %v683
  %v691 = vxor.u32 %v683, 2147483648
  %v692 = vmul.f32 %v691, 1.442695
  %v693 = vpow.pop %v692
  %v694 = vadd.f32 %v693, 1.0
  %v695 = vrcp.pop %v694
  %v696 = vmul.f32 1.0, %v695
  %v698 = vrot.slane %v591, 6
  %v700 = vmul.f32 %v689, %v698
  %v701 = vmul.f32 %v689, %v690
  %703 = vrot.lane.b32.xlu0 %v701, 64
  %v704 = vpop.permute.xlu0 %703
  %v706 = vadd.f32 %v700, %v704
  %v707 = vtanh.pop %v706
  %v708 = vmul.f32 %v696, %v707
  %710 = vrot.lane.b32.xlu0 %v708, 64
  %v711 = vpop.permute.xlu0 %710
  %vm713 = vcmask 523270
  %714 = vst.msk [vmem:[#allocation2] sm:$0xc0] %vm713, %v711
  %v715 = vrot.slane %v708, 6
  %716 = vrot.lane.b32.xlu0 %v715, 64
  %v717 = vpop.permute.xlu0 %716
  %v718 = vsel %vm137, %v717, 0
  %720 = vmatprep.subr.mxu0 0.0
  %721 = vmatpush1.msra.mxu0 0.0
  %722 = vmatprep.subr.mxu0 0.0
  %723 = vmatpush1.msra.mxu0 0.0
  %724 = vmatprep.subr.mxu0 0.0
  %725 = vmatpush1.msra.mxu0 0.0
  %726 = vmatprep.subr.mxu0 0.0
  %727 = vmatpush1.msra.mxu0 0.0
  %728 = vmatprep.subr.mxu0 0.0
  %729 = vmatpush1.msra.mxu0 0.0
  %730 = vmatprep.subr.mxu0 0.0
  %731 = vmatpush1.msra.mxu0 0.0
  %732 = vmatprep.subr.mxu0 0.0
  %733 = vmatpush1.msra.mxu0 0.0
  %734 = vmatprep.subr.mxu0 0.0
  %735 = vmatpush1.msra.mxu0 0.0
  %736 = vmatprep.subr.mxu0 %v171
  %737 = vmatpush1.msra.mxu0 %v170
  %738 = vmatprep.subr.mxu0 %v169
  %739 = vmatpush1.msra.mxu0 %v168
  %740 = vmatprep.subr.mxu0 %v167
  %741 = vmatpush1.msra.mxu0 %v166
  %742 = vmatprep.subr.mxu0 %v165
  %743 = vmatpush1.msra.mxu0 %v164
  %744 = vmatprep.subr.mxu0 %v163
  %745 = vmatpush1.msra.mxu0 %v162
  %746 = vmatprep.subr.mxu0 %v161
  %747 = vmatpush1.msra.mxu0 %v160
  %748 = vmatprep.subr.mxu0 %v159
  %749 = vmatpush1.msra.mxu0 %v158
  %750 = vmatprep.subr.mxu0 %v157
  %751 = vmatpush1.msra.mxu0 %v156
  %752 = vmatprep.subr.mxu0 0.0
  %753 = vmatpush2.msra.mxu0 0.0
  %754 = vmatprep.subr.mxu0 0.0
  %755 = vmatpush2.msra.mxu0 0.0
  %756 = vmatprep.subr.mxu0 0.0
  %757 = vmatpush2.msra.mxu0 0.0
  %758 = vmatprep.subr.mxu0 0.0
  %759 = vmatpush2.msra.mxu0 0.0
  %760 = vmatprep.subr.mxu0 0.0
  %761 = vmatpush2.msra.mxu0 0.0
  %762 = vmatprep.subr.mxu0 0.0
  %763 = vmatpush2.msra.mxu0 0.0
  %764 = vmatprep.subr.mxu0 0.0
  %765 = vmatpush2.msra.mxu0 0.0
  %766 = vmatprep.subr.mxu0 0.0
  %767 = vmatpush2.msra.mxu0 0.0
  %768 = vmatprep.subr.mxu0 0.0
  %769 = vmatpush2.msra.mxu0 0.0
  %770 = vmatprep.subr.mxu0 0.0
  %771 = vmatpush2.msra.mxu0 0.0
  %772 = vmatprep.subr.mxu0 0.0
  %773 = vmatpush2.msra.mxu0 0.0
  %774 = vmatprep.subr.mxu0 0.0
  %775 = vmatpush2.msra.mxu0 0.0
  %776 = vmatprep.subr.mxu0 0.0
  %777 = vmatpush2.msra.mxu0 0.0
  %778 = vmatprep.subr.mxu0 0.0
  %779 = vmatpush2.msra.mxu0 0.0
  %780 = vmatprep.subr.mxu0 0.0
  %781 = vmatpush2.msra.mxu0 0.0
  %782 = vmatprep.subr.mxu0 0.0
  %783 = vmatpush2.msra.mxu0 0.0
  %784 = vmatprep.mubr.f32.mxu0 0.0
  %785 = vmatmul.mubr.f32.gmra.mxu0 %v718
  %v786 = vpop.f32.mrf.mxu0
  %v787 = vadd.f32 0.0, %v786
  %v788 = vpop.f32.mrf.mxu0
  %v789 = vadd.f32 0.0, %v788
  %790 = vdwg.mxu0
  %v791 = vadd.f32 %v265, %v787
  %v792 = vadd.f32 %v267, %v789
  %v793 = vxor.u32 %v791, 2147483648
  %v794 = vmul.f32 %v793, 1.442695
  %v795 = vpow.pop %v794
  %v796 = vadd.f32 %v795, 1.0
  %v797 = vrcp.pop %v796
  %v798 = vmul.f32 1.0, %v797
  %v799 = vtanh.pop %v792
  %v800 = vxor.u32 %v792, 2147483648
  %v801 = vmul.f32 %v800, 1.442695
  %v802 = vpow.pop %v801
  %v803 = vadd.f32 %v802, 1.0
  %v804 = vrcp.pop %v803
  %v805 = vmul.f32 1.0, %v804
  %v807 = vrot.slane %v706, 6
  %v809 = vmul.f32 %v798, %v807
  %v810 = vmul.f32 %v798, %v799
  %812 = vrot.lane.b32.xlu0 %v810, 64
  %v813 = vpop.permute.xlu0 %812
  %v815 = vadd.f32 %v809, %v813
  %v816 = vtanh.pop %v815
  %v817 = vmul.f32 %v805, %v816
  %819 = vrot.lane.b32.xlu0 %v817, 64
  %v820 = vpop.permute.xlu0 %819
  %822 = vst.msk [vmem:[#allocation2 + $0x8] sm:$0x3] %vm371, %v820
  %v823 = vsel %vm137, %v820, 0
  %825 = vmatprep.subr.mxu0 0.0
  %826 = vmatpush1.msra.mxu0 0.0
  %827 = vmatprep.subr.mxu0 0.0
  %828 = vmatpush1.msra.mxu0 0.0
  %829 = vmatprep.subr.mxu0 0.0
  %830 = vmatpush1.msra.mxu0 0.0
  %831 = vmatprep.subr.mxu0 0.0
  %832 = vmatpush1.msra.mxu0 0.0
  %833 = vmatprep.subr.mxu0 0.0
  %834 = vmatpush1.msra.mxu0 0.0
  %835 = vmatprep.subr.mxu0 0.0
  %836 = vmatpush1.msra.mxu0 0.0
  %837 = vmatprep.subr.mxu0 0.0
  %838 = vmatpush1.msra.mxu0 0.0
  %839 = vmatprep.subr.mxu0 0.0
  %840 = vmatpush1.msra.mxu0 0.0
  %841 = vmatprep.subr.mxu0 %v171
  %842 = vmatpush1.msra.mxu0 %v170
  %843 = vmatprep.subr.mxu0 %v169
  %844 = vmatpush1.msra.mxu0 %v168
  %845 = vmatprep.subr.mxu0 %v167
  %846 = vmatpush1.msra.mxu0 %v166
  %847 = vmatprep.subr.mxu0 %v165
  %848 = vmatpush1.msra.mxu0 %v164
  %849 = vmatprep.subr.mxu0 %v163
  %850 = vmatpush1.msra.mxu0 %v162
  %851 = vmatprep.subr.mxu0 %v161
  %852 = vmatpush1.msra.mxu0 %v160
  %853 = vmatprep.subr.mxu0 %v159
  %854 = vmatpush1.msra.mxu0 %v158
  %855 = vmatprep.subr.mxu0 %v157
  %856 = vmatpush1.msra.mxu0 %v156
  %857 = vmatprep.subr.mxu0 0.0
  %858 = vmatpush2.msra.mxu0 0.0
  %859 = vmatprep.subr.mxu0 0.0
  %860 = vmatpush2.msra.mxu0 0.0
  %861 = vmatprep.subr.mxu0 0.0
  %862 = vmatpush2.msra.mxu0 0.0
  %863 = vmatprep.subr.mxu0 0.0
  %864 = vmatpush2.msra.mxu0 0.0
  %865 = vmatprep.subr.mxu0 0.0
  %866 = vmatpush2.msra.mxu0 0.0
  %867 = vmatprep.subr.mxu0 0.0
  %868 = vmatpush2.msra.mxu0 0.0
  %869 = vmatprep.subr.mxu0 0.0
  %870 = vmatpush2.msra.mxu0 0.0
  %871 = vmatprep.subr.mxu0 0.0
  %872 = vmatpush2.msra.mxu0 0.0
  %873 = vmatprep.subr.mxu0 0.0
  %874 = vmatpush2.msra.mxu0 0.0
  %875 = vmatprep.subr.mxu0 0.0
  %876 = vmatpush2.msra.mxu0 0.0
  %877 = vmatprep.subr.mxu0 0.0
  %878 = vmatpush2.msra.mxu0 0.0
  %879 = vmatprep.subr.mxu0 0.0
  %880 = vmatpush2.msra.mxu0 0.0
  %881 = vmatprep.subr.mxu0 0.0
  %882 = vmatpush2.msra.mxu0 0.0
  %883 = vmatprep.subr.mxu0 0.0
  %884 = vmatpush2.msra.mxu0 0.0
  %885 = vmatprep.subr.mxu0 0.0
  %886 = vmatpush2.msra.mxu0 0.0
  %887 = vmatprep.subr.mxu0 0.0
  %888 = vmatpush2.msra.mxu0 0.0
  %889 = vmatprep.mubr.f32.mxu0 0.0
  %890 = vmatmul.mubr.f32.gmra.mxu0 %v823
  %v891 = vpop.f32.mrf.mxu0
  %v892 = vadd.f32 0.0, %v891
  %v893 = vpop.f32.mrf.mxu0
  %v894 = vadd.f32 0.0, %v893
  %895 = vdwg.mxu0
  %v898 = vrot.slane %v892, 6
  %v899 = vrot.slane %v894, 6
  %v902 = vadd.f32 %v265, %v898
  %v903 = vadd.f32 %v267, %v899
  %v904 = vxor.u32 %v902, 2147483648
  %v905 = vmul.f32 %v904, 1.442695
  %v906 = vpow.pop %v905
  %v907 = vadd.f32 %v906, 1.0
  %v908 = vrcp.pop %v907
  %v909 = vmul.f32 1.0, %v908
  %v910 = vtanh.pop %v903
  %v911 = vxor.u32 %v903, 2147483648
  %v912 = vmul.f32 %v911, 1.442695
  %v913 = vpow.pop %v912
  %v914 = vadd.f32 %v913, 1.0
  %v915 = vrcp.pop %v914
  %v916 = vmul.f32 1.0, %v915
  %v918 = vrot.slane %v815, 6
  %v920 = vmul.f32 %v909, %v918
  %v921 = vmul.f32 %v909, %v910
  %923 = vrot.lane.b32.xlu0 %v921, 64
  %v924 = vpop.permute.xlu0 %923
  %v926 = vadd.f32 %v920, %v924
  %v927 = vtanh.pop %v926
  %v928 = vmul.f32 %v916, %v927
  %930 = vrot.lane.b32.xlu0 %v928, 64
  %v931 = vpop.permute.xlu0 %930
  %933 = vst.msk [vmem:[#allocation2 + $0x8] sm:$0xc] %vm483, %v931
  %v934 = vrot.slane %v928, 2
  %935 = vrot.lane.b32.xlu0 %v934, 64
  %v936 = vpop.permute.xlu0 %935
  %v937 = vsel %vm137, %v936, 0
  %939 = vmatprep.subr.mxu0 0.0
  %940 = vmatpush1.msra.mxu0 0.0
  %941 = vmatprep.subr.mxu0 0.0
  %942 = vmatpush1.msra.mxu0 0.0
  %943 = vmatprep.subr.mxu0 0.0
  %944 = vmatpush1.msra.mxu0 0.0
  %945 = vmatprep.subr.mxu0 0.0
  %946 = vmatpush1.msra.mxu0 0.0
  %947 = vmatprep.subr.mxu0 0.0
  %948 = vmatpush1.msra.mxu0 0.0
  %949 = vmatprep.subr.mxu0 0.0
  %950 = vmatpush1.msra.mxu0 0.0
  %951 = vmatprep.subr.mxu0 0.0
  %952 = vmatpush1.msra.mxu0 0.0
  %953 = vmatprep.subr.mxu0 0.0
  %954 = vmatpush1.msra.mxu0 0.0
  %955 = vmatprep.subr.mxu0 %v171
  %956 = vmatpush1.msra.mxu0 %v170
  %957 = vmatprep.subr.mxu0 %v169
  %958 = vmatpush1.msra.mxu0 %v168
  %959 = vmatprep.subr.mxu0 %v167
  %960 = vmatpush1.msra.mxu0 %v166
  %961 = vmatprep.subr.mxu0 %v165
  %962 = vmatpush1.msra.mxu0 %v164
  %963 = vmatprep.subr.mxu0 %v163
  %964 = vmatpush1.msra.mxu0 %v162
  %965 = vmatprep.subr.mxu0 %v161
  %966 = vmatpush1.msra.mxu0 %v160
  %967 = vmatprep.subr.mxu0 %v159
  %968 = vmatpush1.msra.mxu0 %v158
  %969 = vmatprep.subr.mxu0 %v157
  %970 = vmatpush1.msra.mxu0 %v156
  %971 = vmatprep.subr.mxu0 0.0
  %972 = vmatpush2.msra.mxu0 0.0
  %973 = vmatprep.subr.mxu0 0.0
  %974 = vmatpush2.msra.mxu0 0.0
  %975 = vmatprep.subr.mxu0 0.0
  %976 = vmatpush2.msra.mxu0 0.0
  %977 = vmatprep.subr.mxu0 0.0
  %978 = vmatpush2.msra.mxu0 0.0
  %979 = vmatprep.subr.mxu0 0.0
  %980 = vmatpush2.msra.mxu0 0.0
  %981 = vmatprep.subr.mxu0 0.0
  %982 = vmatpush2.msra.mxu0 0.0
  %983 = vmatprep.subr.mxu0 0.0
  %984 = vmatpush2.msra.mxu0 0.0
  %985 = vmatprep.subr.mxu0 0.0
  %986 = vmatpush2.msra.mxu0 0.0
  %987 = vmatprep.subr.mxu0 0.0
  %988 = vmatpush2.msra.mxu0 0.0
  %989 = vmatprep.subr.mxu0 0.0
  %990 = vmatpush2.msra.mxu0 0.0
  %991 = vmatprep.subr.mxu0 0.0
  %992 = vmatpush2.msra.mxu0 0.0
  %993 = vmatprep.subr.mxu0 0.0
  %994 = vmatpush2.msra.mxu0 0.0
  %995 = vmatprep.subr.mxu0 0.0
  %996 = vmatpush2.msra.mxu0 0.0
  %997 = vmatprep.subr.mxu0 0.0
  %998 = vmatpush2.msra.mxu0 0.0
  %999 = vmatprep.subr.mxu0 0.0
  %1000 = vmatpush2.msra.mxu0 0.0
  %1001 = vmatprep.subr.mxu0 0.0
  %1002 = vmatpush2.msra.mxu0 0.0
  %1003 = vmatprep.mubr.f32.mxu0 0.0
  %1004 = vmatmul.mubr.f32.gmra.mxu0 %v937
  %v1005 = vpop.f32.mrf.mxu0
  %v1006 = vadd.f32 0.0, %v1005
  %v1007 = vpop.f32.mrf.mxu0
  %v1008 = vadd.f32 0.0, %v1007
  %1009 = vdwg.mxu0
  %v1012 = vrot.slane %v1006, 4
  %v1013 = vrot.slane %v1008, 4
  %v1016 = vadd.f32 %v265, %v1012
  %v1017 = vadd.f32 %v267, %v1013
  %v1018 = vxor.u32 %v1016, 2147483648
  %v1019 = vmul.f32 %v1018, 1.442695
  %v1020 = vpow.pop %v1019
  %v1021 = vadd.f32 %v1020, 1.0
  %v1022 = vrcp.pop %v1021
  %v1023 = vmul.f32 1.0, %v1022
  %v1024 = vtanh.pop %v1017
  %v1025 = vxor.u32 %v1017, 2147483648
  %v1026 = vmul.f32 %v1025, 1.442695
  %v1027 = vpow.pop %v1026
  %v1028 = vadd.f32 %v1027, 1.0
  %v1029 = vrcp.pop %v1028
  %v1030 = vmul.f32 1.0, %v1029
  %v1032 = vrot.slane %v926, 6
  %v1034 = vmul.f32 %v1023, %v1032
  %v1035 = vmul.f32 %v1023, %v1024
  %1037 = vrot.lane.b32.xlu0 %v1035, 64
  %v1038 = vpop.permute.xlu0 %1037
  %v1040 = vadd.f32 %v1034, %v1038
  %v1041 = vtanh.pop %v1040
  %v1042 = vmul.f32 %v1030, %v1041
  %1044 = vrot.lane.b32.xlu0 %v1042, 64
  %v1045 = vpop.permute.xlu0 %1044
  %1047 = vst.msk [vmem:[#allocation2 + $0x8] sm:$0x30] %vm598, %v1045
  %v1048 = vrot.slane %v1042, 4
  %1049 = vrot.lane.b32.xlu0 %v1048, 64
  %v1050 = vpop.permute.xlu0 %1049
  %v1051 = vsel %vm137, %v1050, 0
  %1053 = vmatprep.subr.mxu0 0.0
  %1054 = vmatpush1.msra.mxu0 0.0
  %1055 = vmatprep.subr.mxu0 0.0
  %1056 = vmatpush1.msra.mxu0 0.0
  %1057 = vmatprep.subr.mxu0 0.0
  %1058 = vmatpush1.msra.mxu0 0.0
  %1059 = vmatprep.subr.mxu0 0.0
  %1060 = vmatpush1.msra.mxu0 0.0
  %1061 = vmatprep.subr.mxu0 0.0
  %1062 = vmatpush1.msra.mxu0 0.0
  %1063 = vmatprep.subr.mxu0 0.0
  %1064 = vmatpush1.msra.mxu0 0.0
  %1065 = vmatprep.subr.mxu0 0.0
  %1066 = vmatpush1.msra.mxu0 0.0
  %1067 = vmatprep.subr.mxu0 0.0
  %1068 = vmatpush1.msra.mxu0 0.0
  %1069 = vmatprep.subr.mxu0 %v171
  %1070 = vmatpush1.msra.mxu0 %v170
  %1071 = vmatprep.subr.mxu0 %v169
  %1072 = vmatpush1.msra.mxu0 %v168
  %1073 = vmatprep.subr.mxu0 %v167
  %1074 = vmatpush1.msra.mxu0 %v166
  %1075 = vmatprep.subr.mxu0 %v165
  %1076 = vmatpush1.msra.mxu0 %v164
  %1077 = vmatprep.subr.mxu0 %v163
  %1078 = vmatpush1.msra.mxu0 %v162
  %1079 = vmatprep.subr.mxu0 %v161
  %1080 = vmatpush1.msra.mxu0 %v160
  %1081 = vmatprep.subr.mxu0 %v159
  %1082 = vmatpush1.msra.mxu0 %v158
  %1083 = vmatprep.subr.mxu0 %v157
  %1084 = vmatpush1.msra.mxu0 %v156
  %1085 = vmatprep.subr.mxu0 0.0
  %1086 = vmatpush2.msra.mxu0 0.0
  %1087 = vmatprep.subr.mxu0 0.0
  %1088 = vmatpush2.msra.mxu0 0.0
  %1089 = vmatprep.subr.mxu0 0.0
  %1090 = vmatpush2.msra.mxu0 0.0
  %1091 = vmatprep.subr.mxu0 0.0
  %1092 = vmatpush2.msra.mxu0 0.0
  %1093 = vmatprep.subr.mxu0 0.0
  %1094 = vmatpush2.msra.mxu0 0.0
  %1095 = vmatprep.subr.mxu0 0.0
  %1096 = vmatpush2.msra.mxu0 0.0
  %1097 = vmatprep.subr.mxu0 0.0
  %1098 = vmatpush2.msra.mxu0 0.0
  %1099 = vmatprep.subr.mxu0 0.0
  %1100 = vmatpush2.msra.mxu0 0.0
  %1101 = vmatprep.subr.mxu0 0.0
  %1102 = vmatpush2.msra.mxu0 0.0
  %1103 = vmatprep.subr.mxu0 0.0
  %1104 = vmatpush2.msra.mxu0 0.0
  %1105 = vmatprep.subr.mxu0 0.0
  %1106 = vmatpush2.msra.mxu0 0.0
  %1107 = vmatprep.subr.mxu0 0.0
  %1108 = vmatpush2.msra.mxu0 0.0
  %1109 = vmatprep.subr.mxu0 0.0
  %1110 = vmatpush2.msra.mxu0 0.0
  %1111 = vmatprep.subr.mxu0 0.0
  %1112 = vmatpush2.msra.mxu0 0.0
  %1113 = vmatprep.subr.mxu0 0.0
  %1114 = vmatpush2.msra.mxu0 0.0
  %1115 = vmatprep.subr.mxu0 0.0
  %1116 = vmatpush2.msra.mxu0 0.0
  %1117 = vmatprep.mubr.f32.mxu0 0.0
  %1118 = vmatmul.mubr.f32.gmra.mxu0 %v1051
  %v1119 = vpop.f32.mrf.mxu0
  %v1120 = vadd.f32 0.0, %v1119
  %v1121 = vpop.f32.mrf.mxu0
  %v1122 = vadd.f32 0.0, %v1121
  %1123 = vdwg.mxu0
  %v1126 = vrot.slane %v1120, 2
  %v1127 = vrot.slane %v1122, 2
  %v1130 = vadd.f32 %v265, %v1126
  %v1131 = vadd.f32 %v267, %v1127
  %v1132 = vxor.u32 %v1130, 2147483648
  %v1133 = vmul.f32 %v1132, 1.442695
  %v1134 = vpow.pop %v1133
  %v1135 = vadd.f32 %v1134, 1.0
  %v1136 = vrcp.pop %v1135
  %v1137 = vmul.f32 1.0, %v1136
  %v1138 = vtanh.pop %v1131
  %v1139 = vxor.u32 %v1131, 2147483648
  %v1140 = vmul.f32 %v1139, 1.442695
  %v1141 = vpow.pop %v1140
  %v1142 = vadd.f32 %v1141, 1.0
  %v1143 = vrcp.pop %v1142
  %v1144 = vmul.f32 1.0, %v1143
  %v1146 = vrot.slane %v1040, 6
  %v1148 = vmul.f32 %v1137, %v1146
  %v1149 = vmul.f32 %v1137, %v1138
  %1151 = vrot.lane.b32.xlu0 %v1149, 64
  %v1152 = vpop.permute.xlu0 %1151
  %v1154 = vadd.f32 %v1148, %v1152
  %v1155 = vtanh.pop %v1154
  %v1156 = vmul.f32 %v1144, %v1155
  %1158 = vrot.lane.b32.xlu0 %v1156, 64
  %v1159 = vpop.permute.xlu0 %1158
  %1161 = vst.msk [vmem:[#allocation2 + $0x8] sm:$0xc0] %vm713, %v1159
  %s1162 = scalar_lea.vmem %s3, 128
  %v1163 = vld [vmem:[%s1162] sm:$0xff]
  %v1164 = vld [vmem:[%s1162 + $0x8] sm:$0xff]
  %v1165 = vld [vmem:[%s1162 + $0x10] sm:$0xff]
  %v1166 = vld [vmem:[%s1162 + $0x18] sm:$0xff]
  %v1167 = vld [vmem:[%s1162 + $0x20] sm:$0xff]
  %v1168 = vld [vmem:[%s1162 + $0x28] sm:$0xff]
  %v1169 = vld [vmem:[%s1162 + $0x30] sm:$0xff]
  %v1170 = vld [vmem:[%s1162 + $0x38] sm:$0xff]
  %v1171 = vld [vmem:[%s1162 + $0x40] sm:$0xff]
  %v1172 = vld [vmem:[%s1162 + $0x48] sm:$0xff]
  %v1173 = vld [vmem:[%s1162 + $0x50] sm:$0xff]
  %v1174 = vld [vmem:[%s1162 + $0x58] sm:$0xff]
  %v1175 = vld [vmem:[%s1162 + $0x60] sm:$0xff]
  %v1176 = vld [vmem:[%s1162 + $0x68] sm:$0xff]
  %v1177 = vld [vmem:[%s1162 + $0x70] sm:$0xff]
  %v1178 = vld [vmem:[%s1162 + $0x78] sm:$0xff]
  %s1179 = scalar_lea.vmem %s4, 128
  %v1180 = vld [vmem:[%s1179] sm:$0xff]
  %v1181 = vld [vmem:[%s1179 + $0x8] sm:$0xff]
  %v1182 = vld [vmem:[%s1179 + $0x10] sm:$0xff]
  %v1183 = vld [vmem:[%s1179 + $0x18] sm:$0xff]
  %v1184 = vld [vmem:[%s1179 + $0x20] sm:$0xff]
  %v1185 = vld [vmem:[%s1179 + $0x28] sm:$0xff]
  %v1186 = vld [vmem:[%s1179 + $0x30] sm:$0xff]
  %v1187 = vld [vmem:[%s1179 + $0x38] sm:$0xff]
  %v1188 = vld [vmem:[%s1179 + $0x40] sm:$0xff]
  %v1189 = vld [vmem:[%s1179 + $0x48] sm:$0xff]
  %v1190 = vld [vmem:[%s1179 + $0x50] sm:$0xff]
  %v1191 = vld [vmem:[%s1179 + $0x58] sm:$0xff]
  %v1192 = vld [vmem:[%s1179 + $0x60] sm:$0xff]
  %v1193 = vld [vmem:[%s1179 + $0x68] sm:$0xff]
  %v1194 = vld [vmem:[%s1179 + $0x70] sm:$0xff]
  %v1195 = vld [vmem:[%s1179 + $0x78] sm:$0xff]
  %s1196 = scalar_lea.vmem %s5, 2
  %v1197 = vld [vmem:[%s1196] sm:$0x3]
  %v1198 = vld [vmem:[#allocation2] sm:$0xff]
  %v1199 = vld [vmem:[#allocation2 + $0x8] sm:$0xff]
  %v1201 = vlaneseq
  %v1202 = vshrl.u32 %v1201, 7
  %v1203 = vsub.s32 0, %v1202
  %v1204 = vrot.slane %v1197, %v1203
  %v1205 = vlaneseq
  %v1206 = vshrl.u32 %v1205, 7
  %v1207 = vsub.s32 1, %v1206
  %v1208 = vrot.slane %v1197, %v1207
  %v1212 = vsel %vm137, %v1198, 0
  %v1215 = vsel %vm137, %v1199, 0
  %1217 = vmatprep.subr.mxu0 0.0
  %1218 = vmatpush1.msra.mxu0 0.0
  %1219 = vmatprep.subr.mxu0 0.0
  %1220 = vmatpush1.msra.mxu0 0.0
  %1221 = vmatprep.subr.mxu0 0.0
  %1222 = vmatpush1.msra.mxu0 0.0
  %1223 = vmatprep.subr.mxu0 0.0
  %1224 = vmatpush1.msra.mxu0 0.0
  %1225 = vmatprep.subr.mxu0 0.0
  %1226 = vmatpush1.msra.mxu0 0.0
  %1227 = vmatprep.subr.mxu0 0.0
  %1228 = vmatpush1.msra.mxu0 0.0
  %1229 = vmatprep.subr.mxu0 0.0
  %1230 = vmatpush1.msra.mxu0 0.0
  %1231 = vmatprep.subr.mxu0 0.0
  %1232 = vmatpush1.msra.mxu0 0.0
  %1233 = vmatprep.subr.mxu0 %v1178
  %1234 = vmatpush1.msra.mxu0 %v1177
  %1235 = vmatprep.subr.mxu0 %v1176
  %1236 = vmatpush1.msra.mxu0 %v1175
  %1237 = vmatprep.subr.mxu0 %v1174
  %1238 = vmatpush1.msra.mxu0 %v1173
  %1239 = vmatprep.subr.mxu0 %v1172
  %1240 = vmatpush1.msra.mxu0 %v1171
  %1241 = vmatprep.subr.mxu0 %v1170
  %1242 = vmatpush1.msra.mxu0 %v1169
  %1243 = vmatprep.subr.mxu0 %v1168
  %1244 = vmatpush1.msra.mxu0 %v1167
  %1245 = vmatprep.subr.mxu0 %v1166
  %1246 = vmatpush1.msra.mxu0 %v1165
  %1247 = vmatprep.subr.mxu0 %v1164
  %1248 = vmatpush1.msra.mxu0 %v1163
  %1249 = vmatprep.subr.mxu0 0.0
  %1250 = vmatpush2.msra.mxu0 0.0
  %1251 = vmatprep.subr.mxu0 0.0
  %1252 = vmatpush2.msra.mxu0 0.0
  %1253 = vmatprep.subr.mxu0 0.0
  %1254 = vmatpush2.msra.mxu0 0.0
  %1255 = vmatprep.subr.mxu0 0.0
  %1256 = vmatpush2.msra.mxu0 0.0
  %1257 = vmatprep.subr.mxu0 0.0
  %1258 = vmatpush2.msra.mxu0 0.0
  %1259 = vmatprep.subr.mxu0 0.0
  %1260 = vmatpush2.msra.mxu0 0.0
  %1261 = vmatprep.subr.mxu0 0.0
  %1262 = vmatpush2.msra.mxu0 0.0
  %1263 = vmatprep.subr.mxu0 0.0
  %1264 = vmatpush2.msra.mxu0 0.0
  %1265 = vmatprep.subr.mxu0 0.0
  %1266 = vmatpush2.msra.mxu0 0.0
  %1267 = vmatprep.subr.mxu0 0.0
  %1268 = vmatpush2.msra.mxu0 0.0
  %1269 = vmatprep.subr.mxu0 0.0
  %1270 = vmatpush2.msra.mxu0 0.0
  %1271 = vmatprep.subr.mxu0 0.0
  %1272 = vmatpush2.msra.mxu0 0.0
  %1273 = vmatprep.subr.mxu0 0.0
  %1274 = vmatpush2.msra.mxu0 0.0
  %1275 = vmatprep.subr.mxu0 0.0
  %1276 = vmatpush2.msra.mxu0 0.0
  %1277 = vmatprep.subr.mxu0 0.0
  %1278 = vmatpush2.msra.mxu0 0.0
  %1279 = vmatprep.subr.mxu0 0.0
  %1280 = vmatpush2.msra.mxu0 0.0
  %1281 = vmatprep.mubr.f32.mxu0 0.0
  %1282 = vmatmul.mubr.f32.gmra.mxu0 %v1212
  %v1283 = vpop.f32.mrf.mxu0
  %v1284 = vadd.f32 %v1204, %v1283
  %v1285 = vpop.f32.mrf.mxu0
  %v1286 = vadd.f32 %v1208, %v1285
  %1287 = vmatprep.mubr.f32.mxu0 0.0
  %1288 = vmatmul.mubr.f32.gmra.mxu0 %v1215
  %v1289 = vpop.f32.mrf.mxu0
  %v1290 = vadd.f32 %v1204, %v1289
  %v1291 = vpop.f32.mrf.mxu0
  %v1292 = vadd.f32 %v1208, %v1291
  %1293 = vdwg.mxu0
  %1294 = vmatprep.subr.mxu0 0.0
  %1295 = vmatpush1.msra.mxu0 0.0
  %1296 = vmatprep.subr.mxu0 0.0
  %1297 = vmatpush1.msra.mxu0 0.0
  %1298 = vmatprep.subr.mxu0 0.0
  %1299 = vmatpush1.msra.mxu0 0.0
  %1300 = vmatprep.subr.mxu0 0.0
  %1301 = vmatpush1.msra.mxu0 0.0
  %1302 = vmatprep.subr.mxu0 0.0
  %1303 = vmatpush1.msra.mxu0 0.0
  %1304 = vmatprep.subr.mxu0 0.0
  %1305 = vmatpush1.msra.mxu0 0.0
  %1306 = vmatprep.subr.mxu0 0.0
  %1307 = vmatpush1.msra.mxu0 0.0
  %1308 = vmatprep.subr.mxu0 0.0
  %1309 = vmatpush1.msra.mxu0 0.0
  %1310 = vmatprep.subr.mxu0 %v1195
  %1311 = vmatpush1.msra.mxu0 %v1194
  %1312 = vmatprep.subr.mxu0 %v1193
  %1313 = vmatpush1.msra.mxu0 %v1192
  %1314 = vmatprep.subr.mxu0 %v1191
  %1315 = vmatpush1.msra.mxu0 %v1190
  %1316 = vmatprep.subr.mxu0 %v1189
  %1317 = vmatpush1.msra.mxu0 %v1188
  %1318 = vmatprep.subr.mxu0 %v1187
  %1319 = vmatpush1.msra.mxu0 %v1186
  %1320 = vmatprep.subr.mxu0 %v1185
  %1321 = vmatpush1.msra.mxu0 %v1184
  %1322 = vmatprep.subr.mxu0 %v1183
  %1323 = vmatpush1.msra.mxu0 %v1182
  %1324 = vmatprep.subr.mxu0 %v1181
  %1325 = vmatpush1.msra.mxu0 %v1180
  %1326 = vmatprep.subr.mxu0 0.0
  %1327 = vmatpush2.msra.mxu0 0.0
  %1328 = vmatprep.subr.mxu0 0.0
  %1329 = vmatpush2.msra.mxu0 0.0
  %1330 = vmatprep.subr.mxu0 0.0
  %1331 = vmatpush2.msra.mxu0 0.0
  %1332 = vmatprep.subr.mxu0 0.0
  %1333 = vmatpush2.msra.mxu0 0.0
  %1334 = vmatprep.subr.mxu0 0.0
  %1335 = vmatpush2.msra.mxu0 0.0
  %1336 = vmatprep.subr.mxu0 0.0
  %1337 = vmatpush2.msra.mxu0 0.0
  %1338 = vmatprep.subr.mxu0 0.0
  %1339 = vmatpush2.msra.mxu0 0.0
  %1340 = vmatprep.subr.mxu0 0.0
  %1341 = vmatpush2.msra.mxu0 0.0
  %1342 = vmatprep.subr.mxu0 0.0
  %1343 = vmatpush2.msra.mxu0 0.0
  %1344 = vmatprep.subr.mxu0 0.0
  %1345 = vmatpush2.msra.mxu0 0.0
  %1346 = vmatprep.subr.mxu0 0.0
  %1347 = vmatpush2.msra.mxu0 0.0
  %1348 = vmatprep.subr.mxu0 0.0
  %1349 = vmatpush2.msra.mxu0 0.0
  %1350 = vmatprep.subr.mxu0 0.0
  %1351 = vmatpush2.msra.mxu0 0.0
  %1352 = vmatprep.subr.mxu0 0.0
  %1353 = vmatpush2.msra.mxu0 0.0
  %1354 = vmatprep.subr.mxu0 0.0
  %1355 = vmatpush2.msra.mxu0 0.0
  %1356 = vmatprep.subr.mxu0 0.0
  %1357 = vmatpush2.msra.mxu0 0.0
  %1358 = vmatprep.mubr.f32.mxu0 0.0
  %1359 = vmatmul.mubr.f32.gmra.mxu0 %v270
  %v1360 = vpop.f32.mrf.mxu0
  %v1361 = vadd.f32 0.0, %v1360
  %v1362 = vpop.f32.mrf.mxu0
  %v1363 = vadd.f32 0.0, %v1362
  %1364 = vdwg.mxu0
  %v1365 = vadd.f32 %v1284, %v1361
  %v1366 = vadd.f32 %v1286, %v1363
  %v1367 = vxor.u32 %v1365, 2147483648
  %v1368 = vmul.f32 %v1367, 1.442695
  %v1369 = vpow.pop %v1368
  %v1370 = vadd.f32 %v1369, 1.0
  %v1371 = vrcp.pop %v1370
  %v1372 = vmul.f32 1.0, %v1371
  %v1373 = vtanh.pop %v1366
  %v1374 = vxor.u32 %v1366, 2147483648
  %v1375 = vmul.f32 %v1374, 1.442695
  %v1376 = vpow.pop %v1375
  %v1377 = vadd.f32 %v1376, 1.0
  %v1378 = vrcp.pop %v1377
  %v1379 = vmul.f32 1.0, %v1378
  %v1380 = vmul.f32 %v1372, 0.0
  %v1381 = vmul.f32 %v1372, %v1373
  %1383 = vrot.lane.b32.xlu0 %v1381, 64
  %v1384 = vpop.permute.xlu0 %1383
  %v1386 = vadd.f32 %v1380, %v1384
  %v1387 = vtanh.pop %v1386
  %v1388 = vmul.f32 %v1379, %v1387
  %1390 = vrot.lane.b32.xlu0 %v1388, 64
  %v1391 = vpop.permute.xlu0 %1390
  %1393 = vst.msk [vmem:[#allocation2] sm:$0x3] %vm371, %v1391
  %v1394 = vsel %vm137, %v1391, 0
  %1396 = vmatprep.subr.mxu0 0.0
  %1397 = vmatpush1.msra.mxu0 0.0
  %1398 = vmatprep.subr.mxu0 0.0
  %1399 = vmatpush1.msra.mxu0 0.0
  %1400 = vmatprep.subr.mxu0 0.0
  %1401 = vmatpush1.msra.mxu0 0.0
  %1402 = vmatprep.subr.mxu0 0.0
  %1403 = vmatpush1.msra.mxu0 0.0
  %1404 = vmatprep.subr.mxu0 0.0
  %1405 = vmatpush1.msra.mxu0 0.0
  %1406 = vmatprep.subr.mxu0 0.0
  %1407 = vmatpush1.msra.mxu0 0.0
  %1408 = vmatprep.subr.mxu0 0.0
  %1409 = vmatpush1.msra.mxu0 0.0
  %1410 = vmatprep.subr.mxu0 0.0
  %1411 = vmatpush1.msra.mxu0 0.0
  %1412 = vmatprep.subr.mxu0 %v1195
  %1413 = vmatpush1.msra.mxu0 %v1194
  %1414 = vmatprep.subr.mxu0 %v1193
  %1415 = vmatpush1.msra.mxu0 %v1192
  %1416 = vmatprep.subr.mxu0 %v1191
  %1417 = vmatpush1.msra.mxu0 %v1190
  %1418 = vmatprep.subr.mxu0 %v1189
  %1419 = vmatpush1.msra.mxu0 %v1188
  %1420 = vmatprep.subr.mxu0 %v1187
  %1421 = vmatpush1.msra.mxu0 %v1186
  %1422 = vmatprep.subr.mxu0 %v1185
  %1423 = vmatpush1.msra.mxu0 %v1184
  %1424 = vmatprep.subr.mxu0 %v1183
  %1425 = vmatpush1.msra.mxu0 %v1182
  %1426 = vmatprep.subr.mxu0 %v1181
  %1427 = vmatpush1.msra.mxu0 %v1180
  %1428 = vmatprep.subr.mxu0 0.0
  %1429 = vmatpush2.msra.mxu0 0.0
  %1430 = vmatprep.subr.mxu0 0.0
  %1431 = vmatpush2.msra.mxu0 0.0
  %1432 = vmatprep.subr.mxu0 0.0
  %1433 = vmatpush2.msra.mxu0 0.0
  %1434 = vmatprep.subr.mxu0 0.0
  %1435 = vmatpush2.msra.mxu0 0.0
  %1436 = vmatprep.subr.mxu0 0.0
  %1437 = vmatpush2.msra.mxu0 0.0
  %1438 = vmatprep.subr.mxu0 0.0
  %1439 = vmatpush2.msra.mxu0 0.0
  %1440 = vmatprep.subr.mxu0 0.0
  %1441 = vmatpush2.msra.mxu0 0.0
  %1442 = vmatprep.subr.mxu0 0.0
  %1443 = vmatpush2.msra.mxu0 0.0
  %1444 = vmatprep.subr.mxu0 0.0
  %1445 = vmatpush2.msra.mxu0 0.0
  %1446 = vmatprep.subr.mxu0 0.0
  %1447 = vmatpush2.msra.mxu0 0.0
  %1448 = vmatprep.subr.mxu0 0.0
  %1449 = vmatpush2.msra.mxu0 0.0
  %1450 = vmatprep.subr.mxu0 0.0
  %1451 = vmatpush2.msra.mxu0 0.0
  %1452 = vmatprep.subr.mxu0 0.0
  %1453 = vmatpush2.msra.mxu0 0.0
  %1454 = vmatprep.subr.mxu0 0.0
  %1455 = vmatpush2.msra.mxu0 0.0
  %1456 = vmatprep.subr.mxu0 0.0
  %1457 = vmatpush2.msra.mxu0 0.0
  %1458 = vmatprep.subr.mxu0 0.0
  %1459 = vmatpush2.msra.mxu0 0.0
  %1460 = vmatprep.mubr.f32.mxu0 0.0
  %1461 = vmatmul.mubr.f32.gmra.mxu0 %v1394
  %v1462 = vpop.f32.mrf.mxu0
  %v1463 = vadd.f32 0.0, %v1462
  %v1464 = vpop.f32.mrf.mxu0
  %v1465 = vadd.f32 0.0, %v1464
  %1466 = vdwg.mxu0
  %v1469 = vrot.slane %v1463, 6
  %v1470 = vrot.slane %v1465, 6
  %v1473 = vadd.f32 %v1284, %v1469
  %v1474 = vadd.f32 %v1286, %v1470
  %v1475 = vxor.u32 %v1473, 2147483648
  %v1476 = vmul.f32 %v1475, 1.442695
  %v1477 = vpow.pop %v1476
  %v1478 = vadd.f32 %v1477, 1.0
  %v1479 = vrcp.pop %v1478
  %v1480 = vmul.f32 1.0, %v1479
  %v1481 = vtanh.pop %v1474
  %v1482 = vxor.u32 %v1474, 2147483648
  %v1483 = vmul.f32 %v1482, 1.442695
  %v1484 = vpow.pop %v1483
  %v1485 = vadd.f32 %v1484, 1.0
  %v1486 = vrcp.pop %v1485
  %v1487 = vmul.f32 1.0, %v1486
  %v1489 = vrot.slane %v1386, 6
  %v1491 = vmul.f32 %v1480, %v1489
  %v1492 = vmul.f32 %v1480, %v1481
  %1494 = vrot.lane.b32.xlu0 %v1492, 64
  %v1495 = vpop.permute.xlu0 %1494
  %v1497 = vadd.f32 %v1491, %v1495
  %v1498 = vtanh.pop %v1497
  %v1499 = vmul.f32 %v1487, %v1498
  %1501 = vrot.lane.b32.xlu0 %v1499, 64
  %v1502 = vpop.permute.xlu0 %1501
  %1504 = vst.msk [vmem:[#allocation2] sm:$0xc] %vm483, %v1502
  %v1505 = vrot.slane %v1499, 2
  %1506 = vrot.lane.b32.xlu0 %v1505, 64
  %v1507 = vpop.permute.xlu0 %1506
  %v1508 = vsel %vm137, %v1507, 0
  %1510 = vmatprep.subr.mxu0 0.0
  %1511 = vmatpush1.msra.mxu0 0.0
  %1512 = vmatprep.subr.mxu0 0.0
  %1513 = vmatpush1.msra.mxu0 0.0
  %1514 = vmatprep.subr.mxu0 0.0
  %1515 = vmatpush1.msra.mxu0 0.0
  %1516 = vmatprep.subr.mxu0 0.0
  %1517 = vmatpush1.msra.mxu0 0.0
  %1518 = vmatprep.subr.mxu0 0.0
  %1519 = vmatpush1.msra.mxu0 0.0
  %1520 = vmatprep.subr.mxu0 0.0
  %1521 = vmatpush1.msra.mxu0 0.0
  %1522 = vmatprep.subr.mxu0 0.0
  %1523 = vmatpush1.msra.mxu0 0.0
  %1524 = vmatprep.subr.mxu0 0.0
  %1525 = vmatpush1.msra.mxu0 0.0
  %1526 = vmatprep.subr.mxu0 %v1195
  %1527 = vmatpush1.msra.mxu0 %v1194
  %1528 = vmatprep.subr.mxu0 %v1193
  %1529 = vmatpush1.msra.mxu0 %v1192
  %1530 = vmatprep.subr.mxu0 %v1191
  %1531 = vmatpush1.msra.mxu0 %v1190
  %1532 = vmatprep.subr.mxu0 %v1189
  %1533 = vmatpush1.msra.mxu0 %v1188
  %1534 = vmatprep.subr.mxu0 %v1187
  %1535 = vmatpush1.msra.mxu0 %v1186
  %1536 = vmatprep.subr.mxu0 %v1185
  %1537 = vmatpush1.msra.mxu0 %v1184
  %1538 = vmatprep.subr.mxu0 %v1183
  %1539 = vmatpush1.msra.mxu0 %v1182
  %1540 = vmatprep.subr.mxu0 %v1181
  %1541 = vmatpush1.msra.mxu0 %v1180
  %1542 = vmatprep.subr.mxu0 0.0
  %1543 = vmatpush2.msra.mxu0 0.0
  %1544 = vmatprep.subr.mxu0 0.0
  %1545 = vmatpush2.msra.mxu0 0.0
  %1546 = vmatprep.subr.mxu0 0.0
  %1547 = vmatpush2.msra.mxu0 0.0
  %1548 = vmatprep.subr.mxu0 0.0
  %1549 = vmatpush2.msra.mxu0 0.0
  %1550 = vmatprep.subr.mxu0 0.0
  %1551 = vmatpush2.msra.mxu0 0.0
  %1552 = vmatprep.subr.mxu0 0.0
  %1553 = vmatpush2.msra.mxu0 0.0
  %1554 = vmatprep.subr.mxu0 0.0
  %1555 = vmatpush2.msra.mxu0 0.0
  %1556 = vmatprep.subr.mxu0 0.0
  %1557 = vmatpush2.msra.mxu0 0.0
  %1558 = vmatprep.subr.mxu0 0.0
  %1559 = vmatpush2.msra.mxu0 0.0
  %1560 = vmatprep.subr.mxu0 0.0
  %1561 = vmatpush2.msra.mxu0 0.0
  %1562 = vmatprep.subr.mxu0 0.0
  %1563 = vmatpush2.msra.mxu0 0.0
  %1564 = vmatprep.subr.mxu0 0.0
  %1565 = vmatpush2.msra.mxu0 0.0
  %1566 = vmatprep.subr.mxu0 0.0
  %1567 = vmatpush2.msra.mxu0 0.0
  %1568 = vmatprep.subr.mxu0 0.0
  %1569 = vmatpush2.msra.mxu0 0.0
  %1570 = vmatprep.subr.mxu0 0.0
  %1571 = vmatpush2.msra.mxu0 0.0
  %1572 = vmatprep.subr.mxu0 0.0
  %1573 = vmatpush2.msra.mxu0 0.0
  %1574 = vmatprep.mubr.f32.mxu0 0.0
  %1575 = vmatmul.mubr.f32.gmra.mxu0 %v1508
  %v1576 = vpop.f32.mrf.mxu0
  %v1577 = vadd.f32 0.0, %v1576
  %v1578 = vpop.f32.mrf.mxu0
  %v1579 = vadd.f32 0.0, %v1578
  %1580 = vdwg.mxu0
  %v1583 = vrot.slane %v1577, 4
  %v1584 = vrot.slane %v1579, 4
  %v1587 = vadd.f32 %v1284, %v1583
  %v1588 = vadd.f32 %v1286, %v1584
  %v1589 = vxor.u32 %v1587, 2147483648
  %v1590 = vmul.f32 %v1589, 1.442695
  %v1591 = vpow.pop %v1590
  %v1592 = vadd.f32 %v1591, 1.0
  %v1593 = vrcp.pop %v1592
  %v1594 = vmul.f32 1.0, %v1593
  %v1595 = vtanh.pop %v1588
  %v1596 = vxor.u32 %v1588, 2147483648
  %v1597 = vmul.f32 %v1596, 1.442695
  %v1598 = vpow.pop %v1597
  %v1599 = vadd.f32 %v1598, 1.0
  %v1600 = vrcp.pop %v1599
  %v1601 = vmul.f32 1.0, %v1600
  %v1603 = vrot.slane %v1497, 6
  %v1605 = vmul.f32 %v1594, %v1603
  %v1606 = vmul.f32 %v1594, %v1595
  %1608 = vrot.lane.b32.xlu0 %v1606, 64
  %v1609 = vpop.permute.xlu0 %1608
  %v1611 = vadd.f32 %v1605, %v1609
  %v1612 = vtanh.pop %v1611
  %v1613 = vmul.f32 %v1601, %v1612
  %1615 = vrot.lane.b32.xlu0 %v1613, 64
  %v1616 = vpop.permute.xlu0 %1615
  %1618 = vst.msk [vmem:[#allocation2] sm:$0x30] %vm598, %v1616
  %v1619 = vrot.slane %v1613, 4
  %1620 = vrot.lane.b32.xlu0 %v1619, 64
  %v1621 = vpop.permute.xlu0 %1620
  %v1622 = vsel %vm137, %v1621, 0
  %1624 = vmatprep.subr.mxu0 0.0
  %1625 = vmatpush1.msra.mxu0 0.0
  %1626 = vmatprep.subr.mxu0 0.0
  %1627 = vmatpush1.msra.mxu0 0.0
  %1628 = vmatprep.subr.mxu0 0.0
  %1629 = vmatpush1.msra.mxu0 0.0
  %1630 = vmatprep.subr.mxu0 0.0
  %1631 = vmatpush1.msra.mxu0 0.0
  %1632 = vmatprep.subr.mxu0 0.0
  %1633 = vmatpush1.msra.mxu0 0.0
  %1634 = vmatprep.subr.mxu0 0.0
  %1635 = vmatpush1.msra.mxu0 0.0
  %1636 = vmatprep.subr.mxu0 0.0
  %1637 = vmatpush1.msra.mxu0 0.0
  %1638 = vmatprep.subr.mxu0 0.0
  %1639 = vmatpush1.msra.mxu0 0.0
  %1640 = vmatprep.subr.mxu0 %v1195
  %1641 = vmatpush1.msra.mxu0 %v1194
  %1642 = vmatprep.subr.mxu0 %v1193
  %1643 = vmatpush1.msra.mxu0 %v1192
  %1644 = vmatprep.subr.mxu0 %v1191
  %1645 = vmatpush1.msra.mxu0 %v1190
  %1646 = vmatprep.subr.mxu0 %v1189
  %1647 = vmatpush1.msra.mxu0 %v1188
  %1648 = vmatprep.subr.mxu0 %v1187
  %1649 = vmatpush1.msra.mxu0 %v1186
  %1650 = vmatprep.subr.mxu0 %v1185
  %1651 = vmatpush1.msra.mxu0 %v1184
  %1652 = vmatprep.subr.mxu0 %v1183
  %1653 = vmatpush1.msra.mxu0 %v1182
  %1654 = vmatprep.subr.mxu0 %v1181
  %1655 = vmatpush1.msra.mxu0 %v1180
  %1656 = vmatprep.subr.mxu0 0.0
  %1657 = vmatpush2.msra.mxu0 0.0
  %1658 = vmatprep.subr.mxu0 0.0
  %1659 = vmatpush2.msra.mxu0 0.0
  %1660 = vmatprep.subr.mxu0 0.0
  %1661 = vmatpush2.msra.mxu0 0.0
  %1662 = vmatprep.subr.mxu0 0.0
  %1663 = vmatpush2.msra.mxu0 0.0
  %1664 = vmatprep.subr.mxu0 0.0
  %1665 = vmatpush2.msra.mxu0 0.0
  %1666 = vmatprep.subr.mxu0 0.0
  %1667 = vmatpush2.msra.mxu0 0.0
  %1668 = vmatprep.subr.mxu0 0.0
  %1669 = vmatpush2.msra.mxu0 0.0
  %1670 = vmatprep.subr.mxu0 0.0
  %1671 = vmatpush2.msra.mxu0 0.0
  %1672 = vmatprep.subr.mxu0 0.0
  %1673 = vmatpush2.msra.mxu0 0.0
  %1674 = vmatprep.subr.mxu0 0.0
  %1675 = vmatpush2.msra.mxu0 0.0
  %1676 = vmatprep.subr.mxu0 0.0
  %1677 = vmatpush2.msra.mxu0 0.0
  %1678 = vmatprep.subr.mxu0 0.0
  %1679 = vmatpush2.msra.mxu0 0.0
  %1680 = vmatprep.subr.mxu0 0.0
  %1681 = vmatpush2.msra.mxu0 0.0
  %1682 = vmatprep.subr.mxu0 0.0
  %1683 = vmatpush2.msra.mxu0 0.0
  %1684 = vmatprep.subr.mxu0 0.0
  %1685 = vmatpush2.msra.mxu0 0.0
  %1686 = vmatprep.subr.mxu0 0.0
  %1687 = vmatpush2.msra.mxu0 0.0
  %1688 = vmatprep.mubr.f32.mxu0 0.0
  %1689 = vmatmul.mubr.f32.gmra.mxu0 %v1622
  %v1690 = vpop.f32.mrf.mxu0
  %v1691 = vadd.f32 0.0, %v1690
  %v1692 = vpop.f32.mrf.mxu0
  %v1693 = vadd.f32 0.0, %v1692
  %1694 = vdwg.mxu0
  %v1697 = vrot.slane %v1691, 2
  %v1698 = vrot.slane %v1693, 2
  %v1701 = vadd.f32 %v1284, %v1697
  %v1702 = vadd.f32 %v1286, %v1698
  %v1703 = vxor.u32 %v1701, 2147483648
  %v1704 = vmul.f32 %v1703, 1.442695
  %v1705 = vpow.pop %v1704
  %v1706 = vadd.f32 %v1705, 1.0
  %v1707 = vrcp.pop %v1706
  %v1708 = vmul.f32 1.0, %v1707
  %v1709 = vtanh.pop %v1702
  %v1710 = vxor.u32 %v1702, 2147483648
  %v1711 = vmul.f32 %v1710, 1.442695
  %v1712 = vpow.pop %v1711
  %v1713 = vadd.f32 %v1712, 1.0
  %v1714 = vrcp.pop %v1713
  %v1715 = vmul.f32 1.0, %v1714
  %v1717 = vrot.slane %v1611, 6
  %v1719 = vmul.f32 %v1708, %v1717
  %v1720 = vmul.f32 %v1708, %v1709
  %1722 = vrot.lane.b32.xlu0 %v1720, 64
  %v1723 = vpop.permute.xlu0 %1722
  %v1725 = vadd.f32 %v1719, %v1723
  %v1726 = vtanh.pop %v1725
  %v1727 = vmul.f32 %v1715, %v1726
  %1729 = vrot.lane.b32.xlu0 %v1727, 64
  %v1730 = vpop.permute.xlu0 %1729
  %1732 = vst.msk [vmem:[#allocation2] sm:$0xc0] %vm713, %v1730
  %v1733 = vrot.slane %v1727, 6
  %1734 = vrot.lane.b32.xlu0 %v1733, 64
  %v1735 = vpop.permute.xlu0 %1734
  %v1736 = vsel %vm137, %v1735, 0
  %1738 = vmatprep.subr.mxu0 0.0
  %1739 = vmatpush1.msra.mxu0 0.0
  %1740 = vmatprep.subr.mxu0 0.0
  %1741 = vmatpush1.msra.mxu0 0.0
  %1742 = vmatprep.subr.mxu0 0.0
  %1743 = vmatpush1.msra.mxu0 0.0
  %1744 = vmatprep.subr.mxu0 0.0
  %1745 = vmatpush1.msra.mxu0 0.0
  %1746 = vmatprep.subr.mxu0 0.0
  %1747 = vmatpush1.msra.mxu0 0.0
  %1748 = vmatprep.subr.mxu0 0.0
  %1749 = vmatpush1.msra.mxu0 0.0
  %1750 = vmatprep.subr.mxu0 0.0
  %1751 = vmatpush1.msra.mxu0 0.0
  %1752 = vmatprep.subr.mxu0 0.0
  %1753 = vmatpush1.msra.mxu0 0.0
  %1754 = vmatprep.subr.mxu0 %v1195
  %1755 = vmatpush1.msra.mxu0 %v1194
  %1756 = vmatprep.subr.mxu0 %v1193
  %1757 = vmatpush1.msra.mxu0 %v1192
  %1758 = vmatprep.subr.mxu0 %v1191
  %1759 = vmatpush1.msra.mxu0 %v1190
  %1760 = vmatprep.subr.mxu0 %v1189
  %1761 = vmatpush1.msra.mxu0 %v1188
  %1762 = vmatprep.subr.mxu0 %v1187
  %1763 = vmatpush1.msra.mxu0 %v1186
  %1764 = vmatprep.subr.mxu0 %v1185
  %1765 = vmatpush1.msra.mxu0 %v1184
  %1766 = vmatprep.subr.mxu0 %v1183
  %1767 = vmatpush1.msra.mxu0 %v1182
  %1768 = vmatprep.subr.mxu0 %v1181
  %1769 = vmatpush1.msra.mxu0 %v1180
  %1770 = vmatprep.subr.mxu0 0.0
  %1771 = vmatpush2.msra.mxu0 0.0
  %1772 = vmatprep.subr.mxu0 0.0
  %1773 = vmatpush2.msra.mxu0 0.0
  %1774 = vmatprep.subr.mxu0 0.0
  %1775 = vmatpush2.msra.mxu0 0.0
  %1776 = vmatprep.subr.mxu0 0.0
  %1777 = vmatpush2.msra.mxu0 0.0
  %1778 = vmatprep.subr.mxu0 0.0
  %1779 = vmatpush2.msra.mxu0 0.0
  %1780 = vmatprep.subr.mxu0 0.0
  %1781 = vmatpush2.msra.mxu0 0.0
  %1782 = vmatprep.subr.mxu0 0.0
  %1783 = vmatpush2.msra.mxu0 0.0
  %1784 = vmatprep.subr.mxu0 0.0
  %1785 = vmatpush2.msra.mxu0 0.0
  %1786 = vmatprep.subr.mxu0 0.0
  %1787 = vmatpush2.msra.mxu0 0.0
  %1788 = vmatprep.subr.mxu0 0.0
  %1789 = vmatpush2.msra.mxu0 0.0
  %1790 = vmatprep.subr.mxu0 0.0
  %1791 = vmatpush2.msra.mxu0 0.0
  %1792 = vmatprep.subr.mxu0 0.0
  %1793 = vmatpush2.msra.mxu0 0.0
  %1794 = vmatprep.subr.mxu0 0.0
  %1795 = vmatpush2.msra.mxu0 0.0
  %1796 = vmatprep.subr.mxu0 0.0
  %1797 = vmatpush2.msra.mxu0 0.0
  %1798 = vmatprep.subr.mxu0 0.0
  %1799 = vmatpush2.msra.mxu0 0.0
  %1800 = vmatprep.subr.mxu0 0.0
  %1801 = vmatpush2.msra.mxu0 0.0
  %1802 = vmatprep.mubr.f32.mxu0 0.0
  %1803 = vmatmul.mubr.f32.gmra.mxu0 %v1736
  %v1804 = vpop.f32.mrf.mxu0
  %v1805 = vadd.f32 0.0, %v1804
  %v1806 = vpop.f32.mrf.mxu0
  %v1807 = vadd.f32 0.0, %v1806
  %1808 = vdwg.mxu0
  %v1809 = vadd.f32 %v1290, %v1805
  %v1810 = vadd.f32 %v1292, %v1807
  %v1811 = vxor.u32 %v1809, 2147483648
  %v1812 = vmul.f32 %v1811, 1.442695
  %v1813 = vpow.pop %v1812
  %v1814 = vadd.f32 %v1813, 1.0
  %v1815 = vrcp.pop %v1814
  %v1816 = vmul.f32 1.0, %v1815
  %v1817 = vtanh.pop %v1810
  %v1818 = vxor.u32 %v1810, 2147483648
  %v1819 = vmul.f32 %v1818, 1.442695
  %v1820 = vpow.pop %v1819
  %v1821 = vadd.f32 %v1820, 1.0
  %v1822 = vrcp.pop %v1821
  %v1823 = vmul.f32 1.0, %v1822
  %v1825 = vrot.slane %v1725, 6
  %v1827 = vmul.f32 %v1816, %v1825
  %v1828 = vmul.f32 %v1816, %v1817
  %1830 = vrot.lane.b32.xlu0 %v1828, 64
  %v1831 = vpop.permute.xlu0 %1830
  %v1833 = vadd.f32 %v1827, %v1831
  %v1834 = vtanh.pop %v1833
  %v1835 = vmul.f32 %v1823, %v1834
  %1837 = vrot.lane.b32.xlu0 %v1835, 64
  %v1838 = vpop.permute.xlu0 %1837
  %1840 = vst.msk [vmem:[#allocation2 + $0x8] sm:$0x3] %vm371, %v1838
  %v1841 = vsel %vm137, %v1838, 0
  %1843 = vmatprep.subr.mxu0 0.0
  %1844 = vmatpush1.msra.mxu0 0.0
  %1845 = vmatprep.subr.mxu0 0.0
  %1846 = vmatpush1.msra.mxu0 0.0
  %1847 = vmatprep.subr.mxu0 0.0
  %1848 = vmatpush1.msra.mxu0 0.0
  %1849 = vmatprep.subr.mxu0 0.0
  %1850 = vmatpush1.msra.mxu0 0.0
  %1851 = vmatprep.subr.mxu0 0.0
  %1852 = vmatpush1.msra.mxu0 0.0
  %1853 = vmatprep.subr.mxu0 0.0
  %1854 = vmatpush1.msra.mxu0 0.0
  %1855 = vmatprep.subr.mxu0 0.0
  %1856 = vmatpush1.msra.mxu0 0.0
  %1857 = vmatprep.subr.mxu0 0.0
  %1858 = vmatpush1.msra.mxu0 0.0
  %1859 = vmatprep.subr.mxu0 %v1195
  %1860 = vmatpush1.msra.mxu0 %v1194
  %1861 = vmatprep.subr.mxu0 %v1193
  %1862 = vmatpush1.msra.mxu0 %v1192
  %1863 = vmatprep.subr.mxu0 %v1191
  %1864 = vmatpush1.msra.mxu0 %v1190
  %1865 = vmatprep.subr.mxu0 %v1189
  %1866 = vmatpush1.msra.mxu0 %v1188
  %1867 = vmatprep.subr.mxu0 %v1187
  %1868 = vmatpush1.msra.mxu0 %v1186
  %1869 = vmatprep.subr.mxu0 %v1185
  %1870 = vmatpush1.msra.mxu0 %v1184
  %1871 = vmatprep.subr.mxu0 %v1183
  %1872 = vmatpush1.msra.mxu0 %v1182
  %1873 = vmatprep.subr.mxu0 %v1181
  %1874 = vmatpush1.msra.mxu0 %v1180
  %1875 = vmatprep.subr.mxu0 0.0
  %1876 = vmatpush2.msra.mxu0 0.0
  %1877 = vmatprep.subr.mxu0 0.0
  %1878 = vmatpush2.msra.mxu0 0.0
  %1879 = vmatprep.subr.mxu0 0.0
  %1880 = vmatpush2.msra.mxu0 0.0
  %1881 = vmatprep.subr.mxu0 0.0
  %1882 = vmatpush2.msra.mxu0 0.0
  %1883 = vmatprep.subr.mxu0 0.0
  %1884 = vmatpush2.msra.mxu0 0.0
  %1885 = vmatprep.subr.mxu0 0.0
  %1886 = vmatpush2.msra.mxu0 0.0
  %1887 = vmatprep.subr.mxu0 0.0
  %1888 = vmatpush2.msra.mxu0 0.0
  %1889 = vmatprep.subr.mxu0 0.0
  %1890 = vmatpush2.msra.mxu0 0.0
  %1891 = vmatprep.subr.mxu0 0.0
  %1892 = vmatpush2.msra.mxu0 0.0
  %1893 = vmatprep.subr.mxu0 0.0
  %1894 = vmatpush2.msra.mxu0 0.0
  %1895 = vmatprep.subr.mxu0 0.0
  %1896 = vmatpush2.msra.mxu0 0.0
  %1897 = vmatprep.subr.mxu0 0.0
  %1898 = vmatpush2.msra.mxu0 0.0
  %1899 = vmatprep.subr.mxu0 0.0
  %1900 = vmatpush2.msra.mxu0 0.0
  %1901 = vmatprep.subr.mxu0 0.0
  %1902 = vmatpush2.msra.mxu0 0.0
  %1903 = vmatprep.subr.mxu0 0.0
  %1904 = vmatpush2.msra.mxu0 0.0
  %1905 = vmatprep.subr.mxu0 0.0
  %1906 = vmatpush2.msra.mxu0 0.0
  %1907 = vmatprep.mubr.f32.mxu0 0.0
  %1908 = vmatmul.mubr.f32.gmra.mxu0 %v1841
  %v1909 = vpop.f32.mrf.mxu0
  %v1910 = vadd.f32 0.0, %v1909
  %v1911 = vpop.f32.mrf.mxu0
  %v1912 = vadd.f32 0.0, %v1911
  %1913 = vdwg.mxu0
  %v1916 = vrot.slane %v1910, 6
  %v1917 = vrot.slane %v1912, 6
  %v1920 = vadd.f32 %v1290, %v1916
  %v1921 = vadd.f32 %v1292, %v1917
  %v1922 = vxor.u32 %v1920, 2147483648
  %v1923 = vmul.f32 %v1922, 1.442695
  %v1924 = vpow.pop %v1923
  %v1925 = vadd.f32 %v1924, 1.0
  %v1926 = vrcp.pop %v1925
  %v1927 = vmul.f32 1.0, %v1926
  %v1928 = vtanh.pop %v1921
  %v1929 = vxor.u32 %v1921, 2147483648
  %v1930 = vmul.f32 %v1929, 1.442695
  %v1931 = vpow.pop %v1930
  %v1932 = vadd.f32 %v1931, 1.0
  %v1933 = vrcp.pop %v1932
  %v1934 = vmul.f32 1.0, %v1933
  %v1936 = vrot.slane %v1833, 6
  %v1938 = vmul.f32 %v1927, %v1936
  %v1939 = vmul.f32 %v1927, %v1928
  %1941 = vrot.lane.b32.xlu0 %v1939, 64
  %v1942 = vpop.permute.xlu0 %1941
  %v1944 = vadd.f32 %v1938, %v1942
  %v1945 = vtanh.pop %v1944
  %v1946 = vmul.f32 %v1934, %v1945
  %1948 = vrot.lane.b32.xlu0 %v1946, 64
  %v1949 = vpop.permute.xlu0 %1948
  %1951 = vst.msk [vmem:[#allocation2 + $0x8] sm:$0xc] %vm483, %v1949
  %v1952 = vrot.slane %v1946, 2
  %1953 = vrot.lane.b32.xlu0 %v1952, 64
  %v1954 = vpop.permute.xlu0 %1953
  %v1955 = vsel %vm137, %v1954, 0
  %1957 = vmatprep.subr.mxu0 0.0
  %1958 = vmatpush1.msra.mxu0 0.0
  %1959 = vmatprep.subr.mxu0 0.0
  %1960 = vmatpush1.msra.mxu0 0.0
  %1961 = vmatprep.subr.mxu0 0.0
  %1962 = vmatpush1.msra.mxu0 0.0
  %1963 = vmatprep.subr.mxu0 0.0
  %1964 = vmatpush1.msra.mxu0 0.0
  %1965 = vmatprep.subr.mxu0 0.0
  %1966 = vmatpush1.msra.mxu0 0.0
  %1967 = vmatprep.subr.mxu0 0.0
  %1968 = vmatpush1.msra.mxu0 0.0
  %1969 = vmatprep.subr.mxu0 0.0
  %1970 = vmatpush1.msra.mxu0 0.0
  %1971 = vmatprep.subr.mxu0 0.0
  %1972 = vmatpush1.msra.mxu0 0.0
  %1973 = vmatprep.subr.mxu0 %v1195
  %1974 = vmatpush1.msra.mxu0 %v1194
  %1975 = vmatprep.subr.mxu0 %v1193
  %1976 = vmatpush1.msra.mxu0 %v1192
  %1977 = vmatprep.subr.mxu0 %v1191
  %1978 = vmatpush1.msra.mxu0 %v1190
  %1979 = vmatprep.subr.mxu0 %v1189
  %1980 = vmatpush1.msra.mxu0 %v1188
  %1981 = vmatprep.subr.mxu0 %v1187
  %1982 = vmatpush1.msra.mxu0 %v1186
  %1983 = vmatprep.subr.mxu0 %v1185
  %1984 = vmatpush1.msra.mxu0 %v1184
  %1985 = vmatprep.subr.mxu0 %v1183
  %1986 = vmatpush1.msra.mxu0 %v1182
  %1987 = vmatprep.subr.mxu0 %v1181
  %1988 = vmatpush1.msra.mxu0 %v1180
  %1989 = vmatprep.subr.mxu0 0.0
  %1990 = vmatpush2.msra.mxu0 0.0
  %1991 = vmatprep.subr.mxu0 0.0
  %1992 = vmatpush2.msra.mxu0 0.0
  %1993 = vmatprep.subr.mxu0 0.0
  %1994 = vmatpush2.msra.mxu0 0.0
  %1995 = vmatprep.subr.mxu0 0.0
  %1996 = vmatpush2.msra.mxu0 0.0
  %1997 = vmatprep.subr.mxu0 0.0
  %1998 = vmatpush2.msra.mxu0 0.0
  %1999 = vmatprep.subr.mxu0 0.0
  %2000 = vmatpush2.msra.mxu0 0.0
  %2001 = vmatprep.subr.mxu0 0.0
  %2002 = vmatpush2.msra.mxu0 0.0
  %2003 = vmatprep.subr.mxu0 0.0
  %2004 = vmatpush2.msra.mxu0 0.0
  %2005 = vmatprep.subr.mxu0 0.0
  %2006 = vmatpush2.msra.mxu0 0.0
  %2007 = vmatprep.subr.mxu0 0.0
  %2008 = vmatpush2.msra.mxu0 0.0
  %2009 = vmatprep.subr.mxu0 0.0
  %2010 = vmatpush2.msra.mxu0 0.0
  %2011 = vmatprep.subr.mxu0 0.0
  %2012 = vmatpush2.msra.mxu0 0.0
  %2013 = vmatprep.subr.mxu0 0.0
  %2014 = vmatpush2.msra.mxu0 0.0
  %2015 = vmatprep.subr.mxu0 0.0
  %2016 = vmatpush2.msra.mxu0 0.0
  %2017 = vmatprep.subr.mxu0 0.0
  %2018 = vmatpush2.msra.mxu0 0.0
  %2019 = vmatprep.subr.mxu0 0.0
  %2020 = vmatpush2.msra.mxu0 0.0
  %2021 = vmatprep.mubr.f32.mxu0 0.0
  %2022 = vmatmul.mubr.f32.gmra.mxu0 %v1955
  %v2023 = vpop.f32.mrf.mxu0
  %v2024 = vadd.f32 0.0, %v2023
  %v2025 = vpop.f32.mrf.mxu0
  %v2026 = vadd.f32 0.0, %v2025
  %2027 = vdwg.mxu0
  %v2030 = vrot.slane %v2024, 4
  %v2031 = vrot.slane %v2026, 4
  %v2034 = vadd.f32 %v1290, %v2030
  %v2035 = vadd.f32 %v1292, %v2031
  %v2036 = vxor.u32 %v2034, 2147483648
  %v2037 = vmul.f32 %v2036, 1.442695
  %v2038 = vpow.pop %v2037
  %v2039 = vadd.f32 %v2038, 1.0
  %v2040 = vrcp.pop %v2039
  %v2041 = vmul.f32 1.0, %v2040
  %v2042 = vtanh.pop %v2035
  %v2043 = vxor.u32 %v2035, 2147483648
  %v2044 = vmul.f32 %v2043, 1.442695
  %v2045 = vpow.pop %v2044
  %v2046 = vadd.f32 %v2045, 1.0
  %v2047 = vrcp.pop %v2046
  %v2048 = vmul.f32 1.0, %v2047
  %v2050 = vrot.slane %v1944, 6
  %v2052 = vmul.f32 %v2041, %v2050
  %v2053 = vmul.f32 %v2041, %v2042
  %2055 = vrot.lane.b32.xlu0 %v2053, 64
  %v2056 = vpop.permute.xlu0 %2055
  %v2058 = vadd.f32 %v2052, %v2056
  %v2059 = vtanh.pop %v2058
  %v2060 = vmul.f32 %v2048, %v2059
  %2062 = vrot.lane.b32.xlu0 %v2060, 64
  %v2063 = vpop.permute.xlu0 %2062
  %2065 = vst.msk [vmem:[#allocation2 + $0x8] sm:$0x30] %vm598, %v2063
  %v2066 = vrot.slane %v2060, 4
  %2067 = vrot.lane.b32.xlu0 %v2066, 64
  %v2068 = vpop.permute.xlu0 %2067
  %v2069 = vsel %vm137, %v2068, 0
  %2071 = vmatprep.subr.mxu0 0.0
  %2072 = vmatpush1.msra.mxu0 0.0
  %2073 = vmatprep.subr.mxu0 0.0
  %2074 = vmatpush1.msra.mxu0 0.0
  %2075 = vmatprep.subr.mxu0 0.0
  %2076 = vmatpush1.msra.mxu0 0.0
  %2077 = vmatprep.subr.mxu0 0.0
  %2078 = vmatpush1.msra.mxu0 0.0
  %2079 = vmatprep.subr.mxu0 0.0
  %2080 = vmatpush1.msra.mxu0 0.0
  %2081 = vmatprep.subr.mxu0 0.0
  %2082 = vmatpush1.msra.mxu0 0.0
  %2083 = vmatprep.subr.mxu0 0.0
  %2084 = vmatpush1.msra.mxu0 0.0
  %2085 = vmatprep.subr.mxu0 0.0
  %2086 = vmatpush1.msra.mxu0 0.0
  %2087 = vmatprep.subr.mxu0 %v1195
  %2088 = vmatpush1.msra.mxu0 %v1194
  %2089 = vmatprep.subr.mxu0 %v1193
  %2090 = vmatpush1.msra.mxu0 %v1192
  %2091 = vmatprep.subr.mxu0 %v1191
  %2092 = vmatpush1.msra.mxu0 %v1190
  %2093 = vmatprep.subr.mxu0 %v1189
  %2094 = vmatpush1.msra.mxu0 %v1188
  %2095 = vmatprep.subr.mxu0 %v1187
  %2096 = vmatpush1.msra.mxu0 %v1186
  %2097 = vmatprep.subr.mxu0 %v1185
  %2098 = vmatpush1.msra.mxu0 %v1184
  %2099 = vmatprep.subr.mxu0 %v1183
  %2100 = vmatpush1.msra.mxu0 %v1182
  %2101 = vmatprep.subr.mxu0 %v1181
  %2102 = vmatpush1.msra.mxu0 %v1180
  %2103 = vmatprep.subr.mxu0 0.0
  %2104 = vmatpush2.msra.mxu0 0.0
  %2105 = vmatprep.subr.mxu0 0.0
  %2106 = vmatpush2.msra.mxu0 0.0
  %2107 = vmatprep.subr.mxu0 0.0
  %2108 = vmatpush2.msra.mxu0 0.0
  %2109 = vmatprep.subr.mxu0 0.0
  %2110 = vmatpush2.msra.mxu0 0.0
  %2111 = vmatprep.subr.mxu0 0.0
  %2112 = vmatpush2.msra.mxu0 0.0
  %2113 = vmatprep.subr.mxu0 0.0
  %2114 = vmatpush2.msra.mxu0 0.0
  %2115 = vmatprep.subr.mxu0 0.0
  %2116 = vmatpush2.msra.mxu0 0.0
  %2117 = vmatprep.subr.mxu0 0.0
  %2118 = vmatpush2.msra.mxu0 0.0
  %2119 = vmatprep.subr.mxu0 0.0
  %2120 = vmatpush2.msra.mxu0 0.0
  %2121 = vmatprep.subr.mxu0 0.0
  %2122 = vmatpush2.msra.mxu0 0.0
  %2123 = vmatprep.subr.mxu0 0.0
  %2124 = vmatpush2.msra.mxu0 0.0
  %2125 = vmatprep.subr.mxu0 0.0
  %2126 = vmatpush2.msra.mxu0 0.0
  %2127 = vmatprep.subr.mxu0 0.0
  %2128 = vmatpush2.msra.mxu0 0.0
  %2129 = vmatprep.subr.mxu0 0.0
  %2130 = vmatpush2.msra.mxu0 0.0
  %2131 = vmatprep.subr.mxu0 0.0
  %2132 = vmatpush2.msra.mxu0 0.0
  %2133 = vmatprep.subr.mxu0 0.0
  %2134 = vmatpush2.msra.mxu0 0.0
  %2135 = vmatprep.mubr.f32.mxu0 0.0
  %2136 = vmatmul.mubr.f32.gmra.mxu0 %v2069
  %v2137 = vpop.f32.mrf.mxu0
  %v2138 = vadd.f32 0.0, %v2137
  %v2139 = vpop.f32.mrf.mxu0
  %v2140 = vadd.f32 0.0, %v2139
  %2141 = vdwg.mxu0
  %v2144 = vrot.slane %v2138, 2
  %v2145 = vrot.slane %v2140, 2
  %v2148 = vadd.f32 %v1290, %v2144
  %v2149 = vadd.f32 %v1292, %v2145
  %v2150 = vxor.u32 %v2148, 2147483648
  %v2151 = vmul.f32 %v2150, 1.442695
  %v2152 = vpow.pop %v2151
  %v2153 = vadd.f32 %v2152, 1.0
  %v2154 = vrcp.pop %v2153
  %v2155 = vmul.f32 1.0, %v2154
  %v2156 = vtanh.pop %v2149
  %v2157 = vxor.u32 %v2149, 2147483648
  %v2158 = vmul.f32 %v2157, 1.442695
  %v2159 = vpow.pop %v2158
  %v2160 = vadd.f32 %v2159, 1.0
  %v2161 = vrcp.pop %v2160
  %v2162 = vmul.f32 1.0, %v2161
  %v2164 = vrot.slane %v2058, 6
  %v2166 = vmul.f32 %v2155, %v2164
  %v2167 = vmul.f32 %v2155, %v2156
  %2169 = vrot.lane.b32.xlu0 %v2167, 64
  %v2170 = vpop.permute.xlu0 %2169
  %v2172 = vadd.f32 %v2166, %v2170
  %v2173 = vtanh.pop %v2172
  %v2174 = vmul.f32 %v2162, %v2173
  %2176 = vrot.lane.b32.xlu0 %v2174, 64
  %v2177 = vpop.permute.xlu0 %2176
  %2179 = vst.msk [vmem:[#allocation2 + $0x8] sm:$0xc0] %vm713, %v2177
  %v2180 = vld [vmem:[#allocation2] sm:$0xff]
  %v2181 = vld [vmem:[#allocation2 + $0x8] sm:$0xff]
  %v2182 = vld [vmem:[%s6] sm:$0x1]
  %v2183 = vld [vmem:[#allocation3] sm:$0x1]
  %2185 = vset.pattern.permute.xlu0 0
  %2186 = vperm.xlu0 %2185, %v2183
  %v2187 = vpop.permute.xlu0 %2186
  %v2189 = vlaneseq
  %v2190 = vshrl.u32 %v2189, 7
  %v2191 = vsub.s32 0, %v2190
  %v2192 = vrot.slane %v2187, %v2191
  %v2194 = vsel %vm137, %v2182, 0
  %v2197 = vsel %vm137, %v2180, 0
  %v2200 = vsel %vm137, %v2181, 0
  %2202 = vmatprep.subr.mxu0 0.0
  %2203 = vmatpush1.xpose.msra.mxu0 0.0
  %2204 = vmatprep.subr.mxu0 0.0
  %2205 = vmatpush1.xpose.msra.mxu0 0.0
  %2206 = vmatprep.subr.mxu0 0.0
  %2207 = vmatpush1.xpose.msra.mxu0 0.0
  %2208 = vmatprep.subr.mxu0 0.0
  %2209 = vmatpush1.xpose.msra.mxu0 0.0
  %2210 = vmatprep.subr.mxu0 0.0
  %2211 = vmatpush1.xpose.msra.mxu0 0.0
  %2212 = vmatprep.subr.mxu0 0.0
  %2213 = vmatpush1.xpose.msra.mxu0 0.0
  %2214 = vmatprep.subr.mxu0 0.0
  %2215 = vmatpush1.xpose.msra.mxu0 0.0
  %2216 = vmatprep.subr.mxu0 0.0
  %2217 = vmatpush1.xpose.msra.mxu0 0.0
  %2218 = vmatprep.subr.mxu0 0.0
  %2219 = vmatpush1.xpose.msra.mxu0 0.0
  %2220 = vmatprep.subr.mxu0 0.0
  %2221 = vmatpush1.xpose.msra.mxu0 0.0
  %2222 = vmatprep.subr.mxu0 0.0
  %2223 = vmatpush1.xpose.msra.mxu0 0.0
  %2224 = vmatprep.subr.mxu0 0.0
  %2225 = vmatpush1.xpose.msra.mxu0 0.0
  %2226 = vmatprep.subr.mxu0 0.0
  %2227 = vmatpush1.xpose.msra.mxu0 0.0
  %2228 = vmatprep.subr.mxu0 0.0
  %2229 = vmatpush1.xpose.msra.mxu0 0.0
  %2230 = vmatprep.subr.mxu0 0.0
  %2231 = vmatpush1.xpose.msra.mxu0 %v2200
  %2232 = vmatprep.subr.mxu0 0.0
  %2233 = vmatpush1.xpose.msra.mxu0 %v2197
  %2234 = vmatprep.subr.mxu0 0.0
  %2235 = vmatpush2.xpose.msra.mxu0 0.0
  %2236 = vmatprep.subr.mxu0 0.0
  %2237 = vmatpush2.xpose.msra.mxu0 0.0
  %2238 = vmatprep.subr.mxu0 0.0
  %2239 = vmatpush2.xpose.msra.mxu0 0.0
  %2240 = vmatprep.subr.mxu0 0.0
  %2241 = vmatpush2.xpose.msra.mxu0 0.0
  %2242 = vmatprep.subr.mxu0 0.0
  %2243 = vmatpush2.xpose.msra.mxu0 0.0
  %2244 = vmatprep.subr.mxu0 0.0
  %2245 = vmatpush2.xpose.msra.mxu0 0.0
  %2246 = vmatprep.subr.mxu0 0.0
  %2247 = vmatpush2.xpose.msra.mxu0 0.0
  %2248 = vmatprep.subr.mxu0 0.0
  %2249 = vmatpush2.xpose.msra.mxu0 0.0
  %2250 = vmatprep.subr.mxu0 0.0
  %2251 = vmatpush2.xpose.msra.mxu0 0.0
  %2252 = vmatprep.subr.mxu0 0.0
  %2253 = vmatpush2.xpose.msra.mxu0 0.0
  %2254 = vmatprep.subr.mxu0 0.0
  %2255 = vmatpush2.xpose.msra.mxu0 0.0
  %2256 = vmatprep.subr.mxu0 0.0
  %2257 = vmatpush2.xpose.msra.mxu0 0.0
  %2258 = vmatprep.subr.mxu0 0.0
  %2259 = vmatpush2.xpose.msra.mxu0 0.0
  %2260 = vmatprep.subr.mxu0 0.0
  %2261 = vmatpush2.xpose.msra.mxu0 0.0
  %2262 = vmatprep.subr.mxu0 0.0
  %2263 = vmatpush2.xpose.msra.mxu0 0.0
  %2264 = vmatprep.subr.mxu0 0.0
  %2265 = vmatpush2.xpose.msra.mxu0 0.0
  %2266 = vmatprep.mubr.f32.mxu0 0.0
  %2267 = vmatmul.mubr.f32.gmra.mxu0 %v2194
  %v2268 = vpop.f32.mrf.mxu0
  %v2269 = vadd.f32 %v2192, %v2268
  %v2270 = vpop.f32.mrf.mxu0
  %2271 = vdwg.mxu0
  %v2272 = vxor.u32 %v2269, 2147483648
  %v2273 = vmul.f32 %v2272, 1.442695
  %v2274 = vpow.pop %v2273
  %v2275 = vadd.f32 %v2274, 1.0
  %v2276 = vrcp.pop %v2275
  %v2277 = vmul.f32 1.0, %v2276
  %vm2278 = vcmask 122880
  %2279 = vst.msk [vmem:[%s8] sm:$0x1] %vm2278, %v2277
  // Predicated region
  $region34: #{lstm_forward.1} parent=0 // pred_check
    _
  $region35: #{lstm_forward.1} parent=0 // pred_check_branch
    %2281 = sbr.rel (0) target = $region37
  $region36: #{lstm_forward.1} parent=0 // pred_region
    _
  $region37: #{lstm_forward.1} parent=0 // pred_fallthru
    _
  // Predicated region
  $region38: #{lstm_forward.1} parent=0 // pred_check
    _
  $region39: #{lstm_forward.1} parent=0 // pred_check_branch
    %2283 = sbr.rel (0) target = $region41
  $region40: #{lstm_forward.1} parent=0 // pred_region
    _
  $region41: #{lstm_forward.1} parent=0 // pred_fallthru
    _

</llo_original>
